<compile_context>
chip_gen: v6e
topology: v6e:2x2x1
jax: 0.10.0
libtpu: 0.0.40
codegen_flags: <defaults>
</compile_context>

<pallas_src>
import jax
import jax.numpy as jnp
from jax.experimental import pallas as pl
from jax.experimental.pallas import tpu as pltpu


def _round_up(a, b):
    return (a + b - 1) // b * b


def _fastgrnn_kernel(zx_ref, h0_ref, ut_ref, db_ref, gates_ref, out_ref, h_ref):
    # zx_ref   : (TB, Bt, H)  compute dtype, TIME-MAJOR: x_t @ W^T + bias_gate
    # h0_ref   : (Bt, H)      f32 initial state for this batch tile
    # ut_ref   : (H, H)       compute dtype, U^T (resident in VMEM)
    # db_ref   : (1, H)       f32, bias_update - bias_gate
    # gates_ref: (1, 2) SMEM  [sigmoid(zeta), sigmoid(nu)]
    # out_ref  : (Bt, TB, H)  hidden states for this block (batch-major, lane-dense)
    # h_ref    : (Bt, H) f32  carried hidden state (persists across time blocks)
    t_blk = pl.program_id(1)

    @pl.when(t_blk == 0)
    def _():
        h_ref[...] = h0_ref[...]

    db = db_ref[...]                      # (1, H) broadcasts over batch
    sig_zeta = gates_ref[0, 0]            # scalars, read once per time block
    sig_nu = gates_ref[0, 1]
    mxu_dtype = ut_ref.dtype

    h = h_ref[...]                        # f32 recurrent state (stays in vregs)
    n_steps = zx_ref.shape[0]
    # Static unroll: only `h` is carried across iterations; all other values are
    # produced and consumed within one step.  Static indices keep the output
    # store on the proven lowering path (see header comment re: fori_loop).
    for i in range(n_steps):
        # Only the h-dependent matmul is on the serial path; U^T is re-read from
        # VMEM each step instead of being pinned in vregs for the whole loop.
        pre = zx_ref[i].astype(jnp.float32) + jnp.dot(
            h.astype(mxu_dtype), ut_ref[...],
            preferred_element_type=jnp.float32)
        z = 0.5 * jnp.tanh(0.5 * pre) + 0.5          # sigmoid via one EUP tanh
        c = jnp.tanh(pre + db)                        # update_nonlinearity='tanh'
        h = z * h + (sig_zeta * (1.0 - z) + sig_nu) * c
        out_ref[:, i, :] = h.astype(out_ref.dtype)
    h_ref[...] = h


def fastgrnn_forward(x_btd, W, U, bias_gate, bias_update, zeta, nu, h0=None, *,
                     time_block=32, batch_tile=None,
                     compute_dtype=jnp.bfloat16, out_dtype=jnp.float32):
    """Run FastGRNNCell recurrently over a batch-first sequence.

    x_btd : [B, T, D]
    W     : [H, D]  (PyTorch convention: forward does x @ W^T)
    U     : [H, H]
    bias_gate, bias_update : [H];  zeta, nu : [1, 1]
    h0    : optional [B, H] initial state (defaults to zeros)
    compute_dtype : MXU-operand / zx-stream dtype (bf16 fast path, f32 exact path)
    Returns [B, T, H] hidden states (out_dtype).
    """
    B, T, D = x_btd.shape
    H = W.shape[0]
    H_pad = _round_up(H, 128)             # lane-dense stores, full MXU N

    if batch_tile is None:
        # >=128 keeps MXU rows busy (review).  On v6e/v7x 256 can be better; on
        # v7x prefer a batch_tile giving >=2 batch tiles so the "parallel" axis
        # spans both TensorCores.  Capped so tiny batches don't over-pad.
        batch_tile = 128
    batch_tile = _round_up(max(8, min(batch_tile, _round_up(B, 8))), 8)
    B_pad = _round_up(B, batch_tile)

    if T <= time_block:
        TB, T_pad = T, T                  # single time block (ok for any T>=1)
    else:
        TB = _round_up(min(time_block, T), 8)
        T_pad = _round_up(T, TB)

    f32 = jnp.float32
    if h0 is None:
        h0 = jnp.zeros((B, H), f32)

    # ---- Hoisted, time-independent GEMM (M = B_pad*T), bias_gate folded in ----
    W_pad = jnp.pad(W.astype(f32), ((0, H_pad - H), (0, 0)))                 # (H_pad, D)
    bg = jnp.pad(bias_gate.astype(f32).reshape(1, H), ((0, 0), (0, H_pad - H)))
    x_p = jnp.pad(x_btd, ((0, B_pad - B), (0, 0), (0, 0))).astype(compute_dtype)
    zx = jnp.einsum('btd,hd->tbh', x_p, W_pad.astype(compute_dtype),
                    preferred_element_type=f32)                              # (T, B_pad, H_pad)
    zx = (zx + bg[None]).astype(compute_dtype)                               # time-major stream
    if T_pad != T:
        zx = jnp.pad(zx, ((0, T_pad - T), (0, 0), (0, 0)))

    # ---- Resident recurrent weights / biases / gate scalars ----
    Ut = jnp.pad(U.astype(f32), ((0, H_pad - H), (0, H_pad - H))).T          # padded U^T
    Ut = Ut.astype(compute_dtype)
    db = jnp.pad((bias_update - bias_gate).astype(f32).reshape(1, H),
                 ((0, 0), (0, H_pad - H)))
    h0_p = jnp.pad(h0.astype(f32), ((0, B_pad - B), (0, H_pad - H)))
    gates = jnp.stack([jax.nn.sigmoid(zeta.reshape(())),
                       jax.nn.sigmoid(nu.reshape(()))]).reshape(1, 2).astype(f32)

    grid = (B_pad // batch_tile, T_pad // TB)

    # VMEM budget: double-buffered zx/out blocks + resident U^T + carried state.
    cbytes = jnp.dtype(compute_dtype).itemsize
    obytes = jnp.dtype(out_dtype).itemsize
    blk = batch_tile * TB * H_pad
    vmem_need = (2 * blk * (cbytes + obytes)
                 + 4 * batch_tile * H_pad * 4
                 + 2 * H_pad * H_pad * cbytes
                 + 8 * H_pad * 4)
    vmem_limit = int(min(max(32 << 20, 2 * vmem_need), 96 << 20))

    out_p = pl.pallas_call(
        _fastgrnn_kernel,
        out_shape=jax.ShapeDtypeStruct((B_pad, T_pad, H_pad), out_dtype),
        grid=grid,
        in_specs=[
            pl.BlockSpec((TB, batch_tile, H_pad), lambda b, t: (t, b, 0)),   # zx (time-major)
            pl.BlockSpec((batch_tile, H_pad), lambda b, t: (b, 0)),          # h0 tile
            pl.BlockSpec((H_pad, H_pad), lambda b, t: (0, 0)),               # U^T (resident)
            pl.BlockSpec((1, H_pad), lambda b, t: (0, 0)),                   # bias_update - bias_gate
            pl.BlockSpec(memory_space=pltpu.MemorySpace.SMEM),               # gate scalars
        ],
        out_specs=pl.BlockSpec((batch_tile, TB, H_pad), lambda b, t: (b, t, 0)),
        scratch_shapes=[pltpu.VMEM((batch_tile, H_pad), jnp.float32)],       # carried h
        compiler_params=pltpu.CompilerParams(
            # batch tiles independent -> parallel (2 TCs on v7x); time is the
            # serial recurrence -> arbitrary.
            dimension_semantics=("parallel", "arbitrary"),
            vmem_limit_bytes=vmem_limit,
        ),
    )(zx, h0_p, Ut, db, gates)

    return out_p[:B, :T, :H]


def fastgrnn_cell(x_bd, state_bh, W, U, bias_gate, bias_update, zeta, nu,
                  **kwargs):
    """Exact FastGRNNCell.forward(input, state) -> new_h, via the same kernel."""
    kwargs.setdefault('compute_dtype', jnp.float32)   # exact path for single step
    out = fastgrnn_forward(x_bd[:, None, :], W, U, bias_gate, bias_update,
                           zeta, nu, h0=state_bh, time_block=1, **kwargs)
    return out[:, 0, :]


# ----------------------------- pure-JAX references -----------------------------

def fastgrnn_cell_reference(x_bd, h_bh, W, U, bias_gate, bias_update, zeta, nu):
    pre = x_bd @ W.T + h_bh @ U.T
    z = jax.nn.sigmoid(pre + bias_gate)
    c = jnp.tanh(pre + bias_update)
    sz = jax.nn.sigmoid(zeta.reshape(()))
    sn = jax.nn.sigmoid(nu.reshape(()))
    return z * h_bh + (sz * (1.0 - z) + sn) * c


def fastgrnn_reference(x_btd, W, U, bias_gate, bias_update, zeta, nu):
    B, _, _ = x_btd.shape
    H = W.shape[0]

    def step(h, x_t):
        h_new = fastgrnn_cell_reference(x_t, h, W, U, bias_gate, bias_update, zeta, nu)
        return h_new, h_new

    h0 = jnp.zeros((B, H), jnp.float32)
    _, hs = jax.lax.scan(step, h0, jnp.transpose(x_btd, (1, 0, 2)))
    return jnp.transpose(hs, (1, 0, 2))


if __name__ == "__main__":
    # Small shapes consistent with FastGRNNCell(input_size=D, hidden_size=H).
    B, T, D, H = 2, 8, 16, 32
    key = jax.random.PRNGKey(0)
    k_x, k_w, k_u, k_h, k_x2 = jax.random.split(key, 5)

    x = jax.random.normal(k_x, (B, T, D), dtype=jnp.float32)

    # Parameters matching FastGRNNCell.__init__ (wRank=None, uRank=None).
    W = 0.1 * jax.random.normal(k_w, (H, D), dtype=jnp.float32)   # [hidden, input]
    U = 0.1 * jax.random.normal(k_u, (H, H), dtype=jnp.float32)
    bias_gate = jnp.ones((H,), dtype=jnp.float32)
    bias_update = jnp.ones((H,), dtype=jnp.float32)
    zeta = jnp.full((1, 1), 1.0, dtype=jnp.float32)    # zetaInit
    nu = jnp.full((1, 1), -4.0, dtype=jnp.float32)     # nuInit

    ref = fastgrnn_reference(x, W, U, bias_gate, bias_update, zeta, nu)

    # 1) Exact-precision path (f32 MXU operands / f32 zx stream).
    out_f32 = jax.block_until_ready(
        fastgrnn_forward(x, W, U, bias_gate, bias_update, zeta, nu,
                         compute_dtype=jnp.float32))
    assert out_f32.shape == (B, T, H)
    assert jnp.allclose(out_f32, ref, atol=1e-4, rtol=1e-4), "f32 path mismatch"

    # 2) Fast default path (bf16 MXU operands / bf16 zx, f32 state & accumulation).
    out_bf = jax.block_until_ready(
        fastgrnn_forward(x, W, U, bias_gate, bias_update, zeta, nu))
    assert jnp.allclose(out_bf, ref, atol=3e-2, rtol=3e-2), "bf16 path mismatch"

    # 3) Longer sequence on the bf16 path: checks drift through the recurrence
    #    and exercises multiple time blocks / the carried-state scratch.
    T2 = 64
    x2 = jax.random.normal(k_x2, (B, T2, D), dtype=jnp.float32)
    ref2 = fastgrnn_reference(x2, W, U, bias_gate, bias_update, zeta, nu)
    out2 = jax.block_until_ready(
        fastgrnn_forward(x2, W, U, bias_gate, bias_update, zeta, nu))
    assert jnp.allclose(out2, ref2, atol=5e-2, rtol=5e-2), "long-seq drift too large"

    # 4) Single-step cell (exact FastGRNNCell.forward(input, state) signature).
    state = 0.5 * jax.random.normal(k_h, (B, H), dtype=jnp.float32)
    new_h = jax.block_until_ready(
        fastgrnn_cell(x[:, 0, :], state, W, U, bias_gate, bias_update, zeta, nu))
    new_h_ref = fastgrnn_cell_reference(x[:, 0, :], state, W, U, bias_gate,
                                        bias_update, zeta, nu)
    assert jnp.allclose(new_h, new_h_ref, atol=1e-4, rtol=1e-4), "cell mismatch"

    print("KERNEL_OK")
</pallas_src>

<mosaic_0001>
module attributes {stable_mosaic.version = 11 : i64} {
  func.func @_fastgrnn_kernel(%arg0: i32, %arg1: i32, %arg2: memref<8x8x128xf32, #tpu.memory_space<vmem>>, %arg3: memref<8x128xf32, #tpu.memory_space<vmem>>, %arg4: memref<128x128xf32, #tpu.memory_space<vmem>>, %arg5: memref<1x128xf32, #tpu.memory_space<vmem>>, %arg6: memref<1x2xf32, #tpu.memory_space<smem>>, %arg7: memref<8x8x128xf32, #tpu.memory_space<vmem>>, %arg8: memref<8x128xf32, #tpu.memory_space<vmem>>) attributes {dimension_semantics = [#tpu.dimension_semantics<parallel>, #tpu.dimension_semantics<arbitrary>], iteration_bounds = array<i64: 1, 1>, scalar_prefetch = 0 : i64, scratch_operands = 1 : i64, tpu.core_type = #tpu.core_type<tc>, window_params = [{transform_indices = @transform_0, window_bounds = array<i64: 8, 8, 128>}, {transform_indices = @transform_1, window_bounds = array<i64: 8, 128>}, {pipeline_mode = #tpu.pipeline_mode<synchronous>, transform_indices = @transform_2, window_bounds = array<i64: 128, 128>}, {pipeline_mode = #tpu.pipeline_mode<synchronous>, transform_indices = @transform_3, window_bounds = array<i64: 1, 128>}, {transform_indices = @transform_4, window_bounds = array<i64: 1, 2>}, {transform_indices = @transform_5, window_bounds = array<i64: 8, 8, 128>}]} {
    %c0_i32 = arith.constant 0 : i32
    %0 = arith.cmpi eq, %arg1, %c0_i32 : i32
    %1 = arith.extui %0 : i1 to i32
    %c0_i32_0 = arith.constant 0 : i32
    %2 = arith.cmpi ne, %1, %c0_i32_0 : i32
    scf.if %2 {
      %c0_106 = arith.constant 0 : index
      %c0_107 = arith.constant 0 : index
      %224 = vector.load %arg3[%c0_106, %c0_107] : memref<8x128xf32, #tpu.memory_space<vmem>>, vector<8x128xf32>
      %c0_108 = arith.constant 0 : index
      %c0_109 = arith.constant 0 : index
      %225 = vector.load %arg8[%c0_108, %c0_109] : memref<8x128xf32, #tpu.memory_space<vmem>>, vector<8x128xf32>
      tpu.vector_store %arg8[%c0_108, %c0_109], %224 {strides = array<i32>} : memref<8x128xf32, #tpu.memory_space<vmem>>, vector<8x128xf32>,
    } else {
    }
    %c0 = arith.constant 0 : index
    %c0_1 = arith.constant 0 : index
    %3 = vector.load %arg5[%c0, %c0_1] : memref<1x128xf32, #tpu.memory_space<vmem>>, vector<1x128xf32>
    %c0_2 = arith.constant 0 : index
    %c0_3 = arith.constant 0 : index
    %4 = memref.load %arg6[%c0_2, %c0_3] : memref<1x2xf32, #tpu.memory_space<smem>>
    %c0_4 = arith.constant 0 : index
    %c1 = arith.constant 1 : index
    %5 = memref.load %arg6[%c0_4, %c1] : memref<1x2xf32, #tpu.memory_space<smem>>
    %c0_5 = arith.constant 0 : index
    %c0_6 = arith.constant 0 : index
    %6 = vector.load %arg8[%c0_5, %c0_6] : memref<8x128xf32, #tpu.memory_space<vmem>>, vector<8x128xf32>
    %c0_7 = arith.constant 0 : index
    %c0_8 = arith.constant 0 : index
    %c0_9 = arith.constant 0 : index
    %7 = vector.load %arg2[%c0_7, %c0_8, %c0_9] : memref<8x8x128xf32, #tpu.memory_space<vmem>>, vector<1x8x128xf32>
    %8 = vector.shape_cast %7 : vector<1x8x128xf32> to vector<8x128xf32>
    %c0_10 = arith.constant 0 : index
    %c0_11 = arith.constant 0 : index
    %9 = vector.load %arg4[%c0_10, %c0_11] : memref<128x128xf32, #tpu.memory_space<vmem>>, vector<128x128xf32>
    %cst = arith.constant dense<0.000000e+00> : vector<8x128xf32>
    %10 = tpu.matmul %6, %9, %cst {dimension_numbers = #tpu.dot_dimension_numbers<[1], [0], [0], [1], [0, 0, 1, 1], [], []>} : vector<8x128xf32>, vector<128x128xf32>, vector<8x128xf32> -> vector<8x128xf32>
    %11 = arith.addf %8, %10 : vector<8x128xf32>
    %cst_12 = arith.constant 5.000000e-01 : f32
    %12 = vector.broadcast %cst_12 : f32 to vector<8x128xf32>
    %13 = arith.mulf %12, %11 : vector<8x128xf32>
    %14 = math.tanh %13 : vector<8x128xf32>
    %cst_13 = arith.constant 5.000000e-01 : f32
    %15 = vector.broadcast %cst_13 : f32 to vector<8x128xf32>
    %16 = arith.mulf %15, %14 : vector<8x128xf32>
    %cst_14 = arith.constant 5.000000e-01 : f32
    %17 = vector.broadcast %cst_14 : f32 to vector<8x128xf32>
    %18 = arith.addf %16, %17 : vector<8x128xf32>
    %19 = vector.broadcast %3 : vector<1x128xf32> to vector<8x128xf32>
    %20 = arith.addf %11, %19 : vector<8x128xf32>
    %21 = math.tanh %20 : vector<8x128xf32>
    %22 = arith.mulf %18, %6 : vector<8x128xf32>
    %cst_15 = arith.constant 1.000000e+00 : f32
    %23 = vector.broadcast %cst_15 : f32 to vector<8x128xf32>
    %24 = arith.subf %23, %18 : vector<8x128xf32>
    %25 = vector.broadcast %4 : f32 to vector<8x128xf32>
    %26 = arith.mulf %25, %24 : vector<8x128xf32>
    %27 = vector.broadcast %5 : f32 to vector<8x128xf32>
    %28 = arith.addf %26, %27 : vector<8x128xf32>
    %29 = arith.mulf %28, %21 : vector<8x128xf32>
    %30 = arith.addf %22, %29 : vector<8x128xf32>
    %c0_16 = arith.constant 0 : index
    %c0_17 = arith.constant 0 : index
    %c0_18 = arith.constant 0 : index
    %31 = vector.load %arg7[%c0_16, %c0_17, %c0_18] : memref<8x8x128xf32, #tpu.memory_space<vmem>>, vector<8x1x128xf32>
    %32 = vector.shape_cast %31 : vector<8x1x128xf32> to vector<8x128xf32>
    %33 = vector.shape_cast %30 : vector<8x128xf32> to vector<8x1x128xf32>
    tpu.vector_store %arg7[%c0_16, %c0_17, %c0_18], %33 {strides = array<i32>} : memref<8x8x128xf32, #tpu.memory_space<vmem>>, vector<8x1x128xf32>,
    %c1_19 = arith.constant 1 : index
    %c0_20 = arith.constant 0 : index
    %c0_21 = arith.constant 0 : index
    %34 = vector.load %arg2[%c1_19, %c0_20, %c0_21] : memref<8x8x128xf32, #tpu.memory_space<vmem>>, vector<1x8x128xf32>
    %35 = vector.shape_cast %34 : vector<1x8x128xf32> to vector<8x128xf32>
    %c0_22 = arith.constant 0 : index
    %c0_23 = arith.constant 0 : index
    %36 = vector.load %arg4[%c0_22, %c0_23] : memref<128x128xf32, #tpu.memory_space<vmem>>, vector<128x128xf32>
    %cst_24 = arith.constant dense<0.000000e+00> : vector<8x128xf32>
    %37 = tpu.matmul %30, %36, %cst_24 {dimension_numbers = #tpu.dot_dimension_numbers<[1], [0], [0], [1], [0, 0, 1, 1], [], []>} : vector<8x128xf32>, vector<128x128xf32>, vector<8x128xf32> -> vector<8x128xf32>
    %38 = arith.addf %35, %37 : vector<8x128xf32>
    %cst_25 = arith.constant 5.000000e-01 : f32
    %39 = vector.broadcast %cst_25 : f32 to vector<8x128xf32>
    %40 = arith.mulf %39, %38 : vector<8x128xf32>
    %41 = math.tanh %40 : vector<8x128xf32>
    %cst_26 = arith.constant 5.000000e-01 : f32
    %42 = vector.broadcast %cst_26 : f32 to vector<8x128xf32>
    %43 = arith.mulf %42, %41 : vector<8x128xf32>
    %cst_27 = arith.constant 5.000000e-01 : f32
    %44 = vector.broadcast %cst_27 : f32 to vector<8x128xf32>
    %45 = arith.addf %43, %44 : vector<8x128xf32>
    %46 = vector.broadcast %3 : vector<1x128xf32> to vector<8x128xf32>
    %47 = arith.addf %38, %46 : vector<8x128xf32>
    %48 = math.tanh %47 : vector<8x128xf32>
    %49 = arith.mulf %45, %30 : vector<8x128xf32>
    %cst_28 = arith.constant 1.000000e+00 : f32
    %50 = vector.broadcast %cst_28 : f32 to vector<8x128xf32>
    %51 = arith.subf %50, %45 : vector<8x128xf32>
    %52 = vector.broadcast %4 : f32 to vector<8x128xf32>
    %53 = arith.mulf %52, %51 : vector<8x128xf32>
    %54 = vector.broadcast %5 : f32 to vector<8x128xf32>
    %55 = arith.addf %53, %54 : vector<8x128xf32>
    %56 = arith.mulf %55, %48 : vector<8x128xf32>
    %57 = arith.addf %49, %56 : vector<8x128xf32>
    %c0_29 = arith.constant 0 : index
    %c1_30 = arith.constant 1 : index
    %c0_31 = arith.constant 0 : index
    %58 = vector.load %arg7[%c0_29, %c1_30, %c0_31] : memref<8x8x128xf32, #tpu.memory_space<vmem>>, vector<8x1x128xf32>
    %59 = vector.shape_cast %58 : vector<8x1x128xf32> to vector<8x128xf32>
    %60 = vector.shape_cast %57 : vector<8x128xf32> to vector<8x1x128xf32>
    tpu.vector_store %arg7[%c0_29, %c1_30, %c0_31], %60 {strides = array<i32>} : memref<8x8x128xf32, #tpu.memory_space<vmem>>, vector<8x1x128xf32>,
    %c2 = arith.constant 2 : index
    %c0_32 = arith.constant 0 : index
    %c0_33 = arith.constant 0 : index
    %61 = vector.load %arg2[%c2, %c0_32, %c0_33] : memref<8x8x128xf32, #tpu.memory_space<vmem>>, vector<1x8x128xf32>
    %62 = vector.shape_cast %61 : vector<1x8x128xf32> to vector<8x128xf32>
    %c0_34 = arith.constant 0 : index
    %c0_35 = arith.constant 0 : index
    %63 = vector.load %arg4[%c0_34, %c0_35] : memref<128x128xf32, #tpu.memory_space<vmem>>, vector<128x128xf32>
    %cst_36 = arith.constant dense<0.000000e+00> : vector<8x128xf32>
    %64 = tpu.matmul %57, %63, %cst_36 {dimension_numbers = #tpu.dot_dimension_numbers<[1], [0], [0], [1], [0, 0, 1, 1], [], []>} : vector<8x128xf32>, vector<128x128xf32>, vector<8x128xf32> -> vector<8x128xf32>
    %65 = arith.addf %62, %64 : vector<8x128xf32>
    %cst_37 = arith.constant 5.000000e-01 : f32
    %66 = vector.broadcast %cst_37 : f32 to vector<8x128xf32>
    %67 = arith.mulf %66, %65 : vector<8x128xf32>
    %68 = math.tanh %67 : vector<8x128xf32>
    %cst_38 = arith.constant 5.000000e-01 : f32
    %69 = vector.broadcast %cst_38 : f32 to vector<8x128xf32>
    %70 = arith.mulf %69, %68 : vector<8x128xf32>
    %cst_39 = arith.constant 5.000000e-01 : f32
    %71 = vector.broadcast %cst_39 : f32 to vector<8x128xf32>
    %72 = arith.addf %70, %71 : vector<8x128xf32>
    %73 = vector.broadcast %3 : vector<1x128xf32> to vector<8x128xf32>
    %74 = arith.addf %65, %73 : vector<8x128xf32>
    %75 = math.tanh %74 : vector<8x128xf32>
    %76 = arith.mulf %72, %57 : vector<8x128xf32>
    %cst_40 = arith.constant 1.000000e+00 : f32
    %77 = vector.broadcast %cst_40 : f32 to vector<8x128xf32>
    %78 = arith.subf %77, %72 : vector<8x128xf32>
    %79 = vector.broadcast %4 : f32 to vector<8x128xf32>
    %80 = arith.mulf %79, %78 : vector<8x128xf32>
    %81 = vector.broadcast %5 : f32 to vector<8x128xf32>
    %82 = arith.addf %80, %81 : vector<8x128xf32>
    %83 = arith.mulf %82, %75 : vector<8x128xf32>
    %84 = arith.addf %76, %83 : vector<8x128xf32>
    %c0_41 = arith.constant 0 : index
    %c2_42 = arith.constant 2 : index
    %c0_43 = arith.constant 0 : index
    %85 = vector.load %arg7[%c0_41, %c2_42, %c0_43] : memref<8x8x128xf32, #tpu.memory_space<vmem>>, vector<8x1x128xf32>
    %86 = vector.shape_cast %85 : vector<8x1x128xf32> to vector<8x128xf32>
    %87 = vector.shape_cast %84 : vector<8x128xf32> to vector<8x1x128xf32>
    tpu.vector_store %arg7[%c0_41, %c2_42, %c0_43], %87 {strides = array<i32>} : memref<8x8x128xf32, #tpu.memory_space<vmem>>, vector<8x1x128xf32>,
    %c3 = arith.constant 3 : index
    %c0_44 = arith.constant 0 : index
    %c0_45 = arith.constant 0 : index
    %88 = vector.load %arg2[%c3, %c0_44, %c0_45] : memref<8x8x128xf32, #tpu.memory_space<vmem>>, vector<1x8x128xf32>
    %89 = vector.shape_cast %88 : vector<1x8x128xf32> to vector<8x128xf32>
    %c0_46 = arith.constant 0 : index
    %c0_47 = arith.constant 0 : index
    %90 = vector.load %arg4[%c0_46, %c0_47] : memref<128x128xf32, #tpu.memory_space<vmem>>, vector<128x128xf32>
    %cst_48 = arith.constant dense<0.000000e+00> : vector<8x128xf32>
    %91 = tpu.matmul %84, %90, %cst_48 {dimension_numbers = #tpu.dot_dimension_numbers<[1], [0], [0], [1], [0, 0, 1, 1], [], []>} : vector<8x128xf32>, vector<128x128xf32>, vector<8x128xf32> -> vector<8x128xf32>
    %92 = arith.addf %89, %91 : vector<8x128xf32>
    %cst_49 = arith.constant 5.000000e-01 : f32
    %93 = vector.broadcast %cst_49 : f32 to vector<8x128xf32>
    %94 = arith.mulf %93, %92 : vector<8x128xf32>
    %95 = math.tanh %94 : vector<8x128xf32>
    %cst_50 = arith.constant 5.000000e-01 : f32
    %96 = vector.broadcast %cst_50 : f32 to vector<8x128xf32>
    %97 = arith.mulf %96, %95 : vector<8x128xf32>
    %cst_51 = arith.constant 5.000000e-01 : f32
    %98 = vector.broadcast %cst_51 : f32 to vector<8x128xf32>
    %99 = arith.addf %97, %98 : vector<8x128xf32>
    %100 = vector.broadcast %3 : vector<1x128xf32> to vector<8x128xf32>
    %101 = arith.addf %92, %100 : vector<8x128xf32>
    %102 = math.tanh %101 : vector<8x128xf32>
    %103 = arith.mulf %99, %84 : vector<8x128xf32>
    %cst_52 = arith.constant 1.000000e+00 : f32
    %104 = vector.broadcast %cst_52 : f32 to vector<8x128xf32>
    %105 = arith.subf %104, %99 : vector<8x128xf32>
    %106 = vector.broadcast %4 : f32 to vector<8x128xf32>
    %107 = arith.mulf %106, %105 : vector<8x128xf32>
    %108 = vector.broadcast %5 : f32 to vector<8x128xf32>
    %109 = arith.addf %107, %108 : vector<8x128xf32>
    %110 = arith.mulf %109, %102 : vector<8x128xf32>
    %111 = arith.addf %103, %110 : vector<8x128xf32>
    %c0_53 = arith.constant 0 : index
    %c3_54 = arith.constant 3 : index
    %c0_55 = arith.constant 0 : index
    %112 = vector.load %arg7[%c0_53, %c3_54, %c0_55] : memref<8x8x128xf32, #tpu.memory_space<vmem>>, vector<8x1x128xf32>
    %113 = vector.shape_cast %112 : vector<8x1x128xf32> to vector<8x128xf32>
    %114 = vector.shape_cast %111 : vector<8x128xf32> to vector<8x1x128xf32>
    tpu.vector_store %arg7[%c0_53, %c3_54, %c0_55], %114 {strides = array<i32>} : memref<8x8x128xf32, #tpu.memory_space<vmem>>, vector<8x1x128xf32>,
    %c4 = arith.constant 4 : index
    %c0_56 = arith.constant 0 : index
    %c0_57 = arith.constant 0 : index
    %115 = vector.load %arg2[%c4, %c0_56, %c0_57] : memref<8x8x128xf32, #tpu.memory_space<vmem>>, vector<1x8x128xf32>
    %116 = vector.shape_cast %115 : vector<1x8x128xf32> to vector<8x128xf32>
    %c0_58 = arith.constant 0 : index
    %c0_59 = arith.constant 0 : index
    %117 = vector.load %arg4[%c0_58, %c0_59] : memref<128x128xf32, #tpu.memory_space<vmem>>, vector<128x128xf32>
    %cst_60 = arith.constant dense<0.000000e+00> : vector<8x128xf32>
    %118 = tpu.matmul %111, %117, %cst_60 {dimension_numbers = #tpu.dot_dimension_numbers<[1], [0], [0], [1], [0, 0, 1, 1], [], []>} : vector<8x128xf32>, vector<128x128xf32>, vector<8x128xf32> -> vector<8x128xf32>
    %119 = arith.addf %116, %118 : vector<8x128xf32>
    %cst_61 = arith.constant 5.000000e-01 : f32
    %120 = vector.broadcast %cst_61 : f32 to vector<8x128xf32>
    %121 = arith.mulf %120, %119 : vector<8x128xf32>
    %122 = math.tanh %121 : vector<8x128xf32>
    %cst_62 = arith.constant 5.000000e-01 : f32
    %123 = vector.broadcast %cst_62 : f32 to vector<8x128xf32>
    %124 = arith.mulf %123, %122 : vector<8x128xf32>
    %cst_63 = arith.constant 5.000000e-01 : f32
    %125 = vector.broadcast %cst_63 : f32 to vector<8x128xf32>
    %126 = arith.addf %124, %125 : vector<8x128xf32>
    %127 = vector.broadcast %3 : vector<1x128xf32> to vector<8x128xf32>
    %128 = arith.addf %119, %127 : vector<8x128xf32>
    %129 = math.tanh %128 : vector<8x128xf32>
    %130 = arith.mulf %126, %111 : vector<8x128xf32>
    %cst_64 = arith.constant 1.000000e+00 : f32
    %131 = vector.broadcast %cst_64 : f32 to vector<8x128xf32>
    %132 = arith.subf %131, %126 : vector<8x128xf32>
    %133 = vector.broadcast %4 : f32 to vector<8x128xf32>
    %134 = arith.mulf %133, %132 : vector<8x128xf32>
    %135 = vector.broadcast %5 : f32 to vector<8x128xf32>
    %136 = arith.addf %134, %135 : vector<8x128xf32>
    %137 = arith.mulf %136, %129 : vector<8x128xf32>
    %138 = arith.addf %130, %137 : vector<8x128xf32>
    %c0_65 = arith.constant 0 : index
    %c4_66 = arith.constant 4 : index
    %c0_67 = arith.constant 0 : index
    %139 = vector.load %arg7[%c0_65, %c4_66, %c0_67] : memref<8x8x128xf32, #tpu.memory_space<vmem>>, vector<8x1x128xf32>
    %140 = vector.shape_cast %139 : vector<8x1x128xf32> to vector<8x128xf32>
    %141 = vector.shape_cast %138 : vector<8x128xf32> to vector<8x1x128xf32>
    tpu.vector_store %arg7[%c0_65, %c4_66, %c0_67], %141 {strides = array<i32>} : memref<8x8x128xf32, #tpu.memory_space<vmem>>, vector<8x1x128xf32>,
    %c5 = arith.constant 5 : index
    %c0_68 = arith.constant 0 : index
    %c0_69 = arith.constant 0 : index
    %142 = vector.load %arg2[%c5, %c0_68, %c0_69] : memref<8x8x128xf32, #tpu.memory_space<vmem>>, vector<1x8x128xf32>
    %143 = vector.shape_cast %142 : vector<1x8x128xf32> to vector<8x128xf32>
    %c0_70 = arith.constant 0 : index
    %c0_71 = arith.constant 0 : index
    %144 = vector.load %arg4[%c0_70, %c0_71] : memref<128x128xf32, #tpu.memory_space<vmem>>, vector<128x128xf32>
    %cst_72 = arith.constant dense<0.000000e+00> : vector<8x128xf32>
    %145 = tpu.matmul %138, %144, %cst_72 {dimension_numbers = #tpu.dot_dimension_numbers<[1], [0], [0], [1], [0, 0, 1, 1], [], []>} : vector<8x128xf32>, vector<128x128xf32>, vector<8x128xf32> -> vector<8x128xf32>
    %146 = arith.addf %143, %145 : vector<8x128xf32>
    %cst_73 = arith.constant 5.000000e-01 : f32
    %147 = vector.broadcast %cst_73 : f32 to vector<8x128xf32>
    %148 = arith.mulf %147, %146 : vector<8x128xf32>
    %149 = math.tanh %148 : vector<8x128xf32>
    %cst_74 = arith.constant 5.000000e-01 : f32
    %150 = vector.broadcast %cst_74 : f32 to vector<8x128xf32>
    %151 = arith.mulf %150, %149 : vector<8x128xf32>
    %cst_75 = arith.constant 5.000000e-01 : f32
    %152 = vector.broadcast %cst_75 : f32 to vector<8x128xf32>
    %153 = arith.addf %151, %152 : vector<8x128xf32>
    %154 = vector.broadcast %3 : vector<1x128xf32> to vector<8x128xf32>
    %155 = arith.addf %146, %154 : vector<8x128xf32>
    %156 = math.tanh %155 : vector<8x128xf32>
    %157 = arith.mulf %153, %138 : vector<8x128xf32>
    %cst_76 = arith.constant 1.000000e+00 : f32
    %158 = vector.broadcast %cst_76 : f32 to vector<8x128xf32>
    %159 = arith.subf %158, %153 : vector<8x128xf32>
    %160 = vector.broadcast %4 : f32 to vector<8x128xf32>
    %161 = arith.mulf %160, %159 : vector<8x128xf32>
    %162 = vector.broadcast %5 : f32 to vector<8x128xf32>
    %163 = arith.addf %161, %162 : vector<8x128xf32>
    %164 = arith.mulf %163, %156 : vector<8x128xf32>
    %165 = arith.addf %157, %164 : vector<8x128xf32>
    %c0_77 = arith.constant 0 : index
    %c5_78 = arith.constant 5 : index
    %c0_79 = arith.constant 0 : index
    %166 = vector.load %arg7[%c0_77, %c5_78, %c0_79] : memref<8x8x128xf32, #tpu.memory_space<vmem>>, vector<8x1x128xf32>
    %167 = vector.shape_cast %166 : vector<8x1x128xf32> to vector<8x128xf32>
    %168 = vector.shape_cast %165 : vector<8x128xf32> to vector<8x1x128xf32>
    tpu.vector_store %arg7[%c0_77, %c5_78, %c0_79], %168 {strides = array<i32>} : memref<8x8x128xf32, #tpu.memory_space<vmem>>, vector<8x1x128xf32>,
    %c6 = arith.constant 6 : index
    %c0_80 = arith.constant 0 : index
    %c0_81 = arith.constant 0 : index
    %169 = vector.load %arg2[%c6, %c0_80, %c0_81] : memref<8x8x128xf32, #tpu.memory_space<vmem>>, vector<1x8x128xf32>
    %170 = vector.shape_cast %169 : vector<1x8x128xf32> to vector<8x128xf32>
    %c0_82 = arith.constant 0 : index
    %c0_83 = arith.constant 0 : index
    %171 = vector.load %arg4[%c0_82, %c0_83] : memref<128x128xf32, #tpu.memory_space<vmem>>, vector<128x128xf32>
    %cst_84 = arith.constant dense<0.000000e+00> : vector<8x128xf32>
    %172 = tpu.matmul %165, %171, %cst_84 {dimension_numbers = #tpu.dot_dimension_numbers<[1], [0], [0], [1], [0, 0, 1, 1], [], []>} : vector<8x128xf32>, vector<128x128xf32>, vector<8x128xf32> -> vector<8x128xf32>
    %173 = arith.addf %170, %172 : vector<8x128xf32>
    %cst_85 = arith.constant 5.000000e-01 : f32
    %174 = vector.broadcast %cst_85 : f32 to vector<8x128xf32>
    %175 = arith.mulf %174, %173 : vector<8x128xf32>
    %176 = math.tanh %175 : vector<8x128xf32>
    %cst_86 = arith.constant 5.000000e-01 : f32
    %177 = vector.broadcast %cst_86 : f32 to vector<8x128xf32>
    %178 = arith.mulf %177, %176 : vector<8x128xf32>
    %cst_87 = arith.constant 5.000000e-01 : f32
    %179 = vector.broadcast %cst_87 : f32 to vector<8x128xf32>
    %180 = arith.addf %178, %179 : vector<8x128xf32>
    %181 = vector.broadcast %3 : vector<1x128xf32> to vector<8x128xf32>
    %182 = arith.addf %173, %181 : vector<8x128xf32>
    %183 = math.tanh %182 : vector<8x128xf32>
    %184 = arith.mulf %180, %165 : vector<8x128xf32>
    %cst_88 = arith.constant 1.000000e+00 : f32
    %185 = vector.broadcast %cst_88 : f32 to vector<8x128xf32>
    %186 = arith.subf %185, %180 : vector<8x128xf32>
    %187 = vector.broadcast %4 : f32 to vector<8x128xf32>
    %188 = arith.mulf %187, %186 : vector<8x128xf32>
    %189 = vector.broadcast %5 : f32 to vector<8x128xf32>
    %190 = arith.addf %188, %189 : vector<8x128xf32>
    %191 = arith.mulf %190, %183 : vector<8x128xf32>
    %192 = arith.addf %184, %191 : vector<8x128xf32>
    %c0_89 = arith.constant 0 : index
    %c6_90 = arith.constant 6 : index
    %c0_91 = arith.constant 0 : index
    %193 = vector.load %arg7[%c0_89, %c6_90, %c0_91] : memref<8x8x128xf32, #tpu.memory_space<vmem>>, vector<8x1x128xf32>
    %194 = vector.shape_cast %193 : vector<8x1x128xf32> to vector<8x128xf32>
    %195 = vector.shape_cast %192 : vector<8x128xf32> to vector<8x1x128xf32>
    tpu.vector_store %arg7[%c0_89, %c6_90, %c0_91], %195 {strides = array<i32>} : memref<8x8x128xf32, #tpu.memory_space<vmem>>, vector<8x1x128xf32>,
    %c7 = arith.constant 7 : index
    %c0_92 = arith.constant 0 : index
    %c0_93 = arith.constant 0 : index
    %196 = vector.load %arg2[%c7, %c0_92, %c0_93] : memref<8x8x128xf32, #tpu.memory_space<vmem>>, vector<1x8x128xf32>
    %197 = vector.shape_cast %196 : vector<1x8x128xf32> to vector<8x128xf32>
    %c0_94 = arith.constant 0 : index
    %c0_95 = arith.constant 0 : index
    %198 = vector.load %arg4[%c0_94, %c0_95] : memref<128x128xf32, #tpu.memory_space<vmem>>, vector<128x128xf32>
    %cst_96 = arith.constant dense<0.000000e+00> : vector<8x128xf32>
    %199 = tpu.matmul %192, %198, %cst_96 {dimension_numbers = #tpu.dot_dimension_numbers<[1], [0], [0], [1], [0, 0, 1, 1], [], []>} : vector<8x128xf32>, vector<128x128xf32>, vector<8x128xf32> -> vector<8x128xf32>
    %200 = arith.addf %197, %199 : vector<8x128xf32>
    %cst_97 = arith.constant 5.000000e-01 : f32
    %201 = vector.broadcast %cst_97 : f32 to vector<8x128xf32>
    %202 = arith.mulf %201, %200 : vector<8x128xf32>
    %203 = math.tanh %202 : vector<8x128xf32>
    %cst_98 = arith.constant 5.000000e-01 : f32
    %204 = vector.broadcast %cst_98 : f32 to vector<8x128xf32>
    %205 = arith.mulf %204, %203 : vector<8x128xf32>
    %cst_99 = arith.constant 5.000000e-01 : f32
    %206 = vector.broadcast %cst_99 : f32 to vector<8x128xf32>
    %207 = arith.addf %205, %206 : vector<8x128xf32>
    %208 = vector.broadcast %3 : vector<1x128xf32> to vector<8x128xf32>
    %209 = arith.addf %200, %208 : vector<8x128xf32>
    %210 = math.tanh %209 : vector<8x128xf32>
    %211 = arith.mulf %207, %192 : vector<8x128xf32>
    %cst_100 = arith.constant 1.000000e+00 : f32
    %212 = vector.broadcast %cst_100 : f32 to vector<8x128xf32>
    %213 = arith.subf %212, %207 : vector<8x128xf32>
    %214 = vector.broadcast %4 : f32 to vector<8x128xf32>
    %215 = arith.mulf %214, %213 : vector<8x128xf32>
    %216 = vector.broadcast %5 : f32 to vector<8x128xf32>
    %217 = arith.addf %215, %216 : vector<8x128xf32>
    %218 = arith.mulf %217, %210 : vector<8x128xf32>
    %219 = arith.addf %211, %218 : vector<8x128xf32>
    %c0_101 = arith.constant 0 : index
    %c7_102 = arith.constant 7 : index
    %c0_103 = arith.constant 0 : index
    %220 = vector.load %arg7[%c0_101, %c7_102, %c0_103] : memref<8x8x128xf32, #tpu.memory_space<vmem>>, vector<8x1x128xf32>
    %221 = vector.shape_cast %220 : vector<8x1x128xf32> to vector<8x128xf32>
    %222 = vector.shape_cast %219 : vector<8x128xf32> to vector<8x1x128xf32>
    tpu.vector_store %arg7[%c0_101, %c7_102, %c0_103], %222 {strides = array<i32>} : memref<8x8x128xf32, #tpu.memory_space<vmem>>, vector<8x1x128xf32>,
    %c0_104 = arith.constant 0 : index
    %c0_105 = arith.constant 0 : index
    %223 = vector.load %arg8[%c0_104, %c0_105] : memref<8x128xf32, #tpu.memory_space<vmem>>, vector<8x128xf32>
    tpu.vector_store %arg8[%c0_104, %c0_105], %219 {strides = array<i32>} : memref<8x128xf32, #tpu.memory_space<vmem>>, vector<8x128xf32>,
    return
  }
  func.func @transform_0(%arg0: i32, %arg1: i32) -> (i32, i32, i32) {
    %c0_i32 = arith.constant 0 : i32
    %c0_i32_0 = arith.constant 0 : i32
    return %arg1, %arg0, %c0_i32 : i32, i32, i32
  }
  func.func @transform_1(%arg0: i32, %arg1: i32) -> (i32, i32) {
    %c0_i32 = arith.constant 0 : i32
    %c0_i32_0 = arith.constant 0 : i32
    return %arg0, %c0_i32 : i32, i32
  }
  func.func @transform_2(%arg0: i32, %arg1: i32) -> (i32, i32) {
    %c0_i32 = arith.constant 0 : i32
    %c0_i32_0 = arith.constant 0 : i32
    %c0_i32_1 = arith.constant 0 : i32
    return %c0_i32, %c0_i32_0 : i32, i32
  }
  func.func @transform_3(%arg0: i32, %arg1: i32) -> (i32, i32) {
    %c0_i32 = arith.constant 0 : i32
    %c0_i32_0 = arith.constant 0 : i32
    %c0_i32_1 = arith.constant 0 : i32
    return %c0_i32, %c0_i32_0 : i32, i32
  }
  func.func @transform_4(%arg0: i32, %arg1: i32) -> (i32, i32) {
    %c0_i32 = arith.constant 0 : i32
    %c0_i32_0 = arith.constant 0 : i32
    %c0_i32_1 = arith.constant 0 : i32
    return %c0_i32, %c0_i32_0 : i32, i32
  }
  func.func @transform_5(%arg0: i32, %arg1: i32) -> (i32, i32, i32) {
    %c0_i32 = arith.constant 0 : i32
    %c0_i32_0 = arith.constant 0 : i32
    return %arg0, %arg1, %c0_i32 : i32, i32, i32
  }
}

</mosaic_0001>

<llo_original>
// kernel: tpu_custom_call.1
$region0: #{tpu_custom_call.1}
  #allocation0 [shape = 'u32[]', space=smem, size = 0x4, offset = 0x4, fixed_abs, tag = 'smem constant byte address 0x4 - core index']
  #allocation1 [shape = 'u32[144,128]{1,0:T(1,128)}', space=vmem, size = 0x12000, scoped, tag = 'internal scratch']
  #allocation2 [shape = 'f32[8,128]{1,0:T(8,128)}', space=vmem, size = 0x1000, scoped, tag = 'scratch operand']
  %s0 = inlined_call_operand.hbm [shape: f32[8,8,128], index: 0, kind: input, shape index: {}]
  %s1 = inlined_call_operand.hbm [shape: f32[8,128], index: 1, kind: input, shape index: {}]
  %s2 = inlined_call_operand.hbm [shape: f32[128,128], index: 2, kind: input, shape index: {}]
  %s3 = inlined_call_operand.vmem [shape: f32[1,128], index: 3, kind: input, shape index: {}]
  %s4 = inlined_call_operand.vmem [shape: f32[1,2], index: 4, kind: input, shape index: {}]
  %s5 = inlined_call_operand.hbm [shape: f32[8,8,128], index: 5, kind: output, shape index: {}]
  %s6 = sld [smem:[#allocation0]]
  $region50: #{tpu_custom_call.1} parent=0
    _
  %s8 = ssub.s32 1, %s6
  %s9 = scalar_select 0, %s8, %s6
  $region1: #{tpu_custom_call.1} parent=0
    #allocation3 [shape = 'u8[32768]{0}', space=vmem, size = 0x8000, scoped, tag = 'input window, operand 0, single buffered']
    #allocation4 [shape = 's32[1]{0}', space=sflag, size = 0x4, scoped, tag = 'scoped memory for tpu_custom_call.1']
    #allocation5 [shape = 's32[1]{0}', space=sflag, size = 0x4, scoped, tag = 'scoped memory for tpu_custom_call.1']
    #allocation6 [shape = 's32[1]{0}', space=sflag, size = 0x4, scoped, tag = 'scoped memory for tpu_custom_call.1']
    #allocation7 [shape = 'u8[4096]{0}', space=vmem, size = 0x1000, scoped, tag = 'input window, operand 1, single buffered']
    #allocation8 [shape = 's32[1]{0}', space=sflag, size = 0x4, scoped, tag = 'scoped memory for tpu_custom_call.1']
    #allocation9 [shape = 'u8[65536]{0}', space=vmem, size = 0x10000, scoped, tag = 'input window, operand 2, single buffered']
    #allocation10 [shape = 'u8[512]{0}', space=smem, size = 0x200, scoped, tag = 'input window, operand 4, single buffered']
    #allocation11 [shape = 'u8[32768]{0}', space=vmem, size = 0x8000, scoped, tag = 'output window, operand 0, single buffered']
    %10 = vsyncpa [#allocation4], 0
    %11 = vsyncpa [#allocation8], 0
    %12 = vsyncpa [#allocation6], 0
    %13 = vsyncpa [#allocation5], 0
    // Predicated region
    $region2: #{tpu_custom_call.1} parent=1 // pred_check
      _
    $region3: #{tpu_custom_call.1} parent=1 // pred_check_branch
      %15 = sbr.rel (0) target = $region5
    $region4: #{tpu_custom_call.1} parent=1 // pred_region
      %s17 = ssub.s32 1024, 1024
      %18 = vsyncadd [#allocation4], %s17
      %s19 = sshll.u32 [#allocation3], 4
      %s20 = int_to_ptr.vmem [resolvable:$true] %s19
      %25 = dma.hbm_to_vmem [thread:$0]  %s0, 1024, %s20, [#allocation4], 128, 128, 8
    $region5: #{tpu_custom_call.1} parent=1 // pred_fallthru
      _
    // Predicated region
    $region6: #{tpu_custom_call.1} parent=1 // pred_check
      _
    $region7: #{tpu_custom_call.1} parent=1 // pred_check_branch
      %27 = sbr.rel (0) target = $region9
    $region8: #{tpu_custom_call.1} parent=1 // pred_region
      %s29 = ssub.s32 128, 128
      %30 = vsyncadd [#allocation8], %s29
      %s32 = sshll.u32 [#allocation7], 4
      %s33 = int_to_ptr.vmem [resolvable:$true] %s32
      %35 = dma.hbm_to_vmem [thread:$0]  %s1, 128, %s33, [#allocation8]
    $region9: #{tpu_custom_call.1} parent=1 // pred_fallthru
      _
    // Predicated region
    $region10: #{tpu_custom_call.1} parent=1 // pred_check
      _
    $region11: #{tpu_custom_call.1} parent=1 // pred_check_branch
      %37 = sbr.rel (0) target = $region13
    $region12: #{tpu_custom_call.1} parent=1 // pred_region
      %s39 = ssub.s32 2048, 2048
      %40 = vsyncadd [#allocation8], %s39
      %s41 = sshll.u32 [#allocation9], 4
      %s42 = int_to_ptr.vmem [resolvable:$true] %s41
      %47 = dma.hbm_to_vmem [thread:$0]  %s2, 2048, %s42, [#allocation8], 128, 128, 8
    $region13: #{tpu_custom_call.1} parent=1 // pred_fallthru
      _
    // Predicated region
    $region14: #{tpu_custom_call.1} parent=1 // pred_check
      _
    $region15: #{tpu_custom_call.1} parent=1 // pred_check_branch
      %49 = sbr.rel (0) target = $region17
    $region16: #{tpu_custom_call.1} parent=1 // pred_region
      _
    $region17: #{tpu_custom_call.1} parent=1 // pred_fallthru
      _
    // Predicated region
    $region18: #{tpu_custom_call.1} parent=1 // pred_check
      _
    $region19: #{tpu_custom_call.1} parent=1 // pred_check_branch
      %51 = sbr.rel (0) target = $region21
    $region20: #{tpu_custom_call.1} parent=1 // pred_region
      %s53 = ssub.s32 16, 16
      %54 = vsyncadd [#allocation6], %s53
      %s56 = sshll.u32 %s4, 4
      %s57 = int_to_ptr.vmem [resolvable:$true] %s56
      %59 = dma.vmem_to_smem %s57, 16, [#allocation10], [#allocation6]
    $region21: #{tpu_custom_call.1} parent=1 // pred_fallthru
      _
    // Predicated region
    $region22: #{tpu_custom_call.1} parent=1 // pred_check
      _
    $region23: #{tpu_custom_call.1} parent=1 // pred_check_branch
      %61 = sbr.rel (0) target = $region25
    $region24: #{tpu_custom_call.1} parent=1 // pred_region
      %62 = dma.done [#allocation4], 1024
    $region25: #{tpu_custom_call.1} parent=1 // pred_fallthru
      _
    // Predicated region
    $region26: #{tpu_custom_call.1} parent=1 // pred_check
      _
    $region27: #{tpu_custom_call.1} parent=1 // pred_check_branch
      %64 = sbr.rel (0) target = $region29
    $region28: #{tpu_custom_call.1} parent=1 // pred_region
      %65 = dma.done [#allocation8], 128
    $region29: #{tpu_custom_call.1} parent=1 // pred_fallthru
      _
    // Predicated region
    $region30: #{tpu_custom_call.1} parent=1 // pred_check
      _
    $region31: #{tpu_custom_call.1} parent=1 // pred_check_branch
      %67 = sbr.rel (0) target = $region33
    $region32: #{tpu_custom_call.1} parent=1 // pred_region
      %68 = dma.done [#allocation8], 2048
    $region33: #{tpu_custom_call.1} parent=1 // pred_fallthru
      _
    // Predicated region
    $region34: #{tpu_custom_call.1} parent=1 // pred_check
      _
    $region35: #{tpu_custom_call.1} parent=1 // pred_check_branch
      %70 = sbr.rel (0) target = $region37
    $region36: #{tpu_custom_call.1} parent=1 // pred_region
      %71 = dma.done [#allocation6], 16
    $region37: #{tpu_custom_call.1} parent=1 // pred_fallthru
      _
    %72 = sfence
    %p73 = scmp.eq.s32.totalorder 0, 0
    // Predicated region
    $region38: #{tpu_custom_call.1} parent=1 // pred_check
      %p74 = pneg %p73
    $region39: #{tpu_custom_call.1} parent=1 // pred_check_branch
      %76 = sbr.rel (%p74) target = $region41
    $region40: #{tpu_custom_call.1} parent=1 // pred_region
      %v77 = vld [vmem:[#allocation7] sm:$0xff]
      %78 = vst [vmem:[#allocation2] sm:$0xff] %v77
    $region41: #{tpu_custom_call.1} parent=1 // pred_fallthru
      _
    %v79 = vld [vmem:[%s3] sm:$0x1]
    %s80 = sld [smem:[#allocation10]]
    %s81 = sld [smem:[#allocation10 + $0x1]]
    %v82 = vld [vmem:[#allocation2] sm:$0xff]
    %v83 = vld [vmem:[#allocation3] sm:$0xff]
    %v84 = vld [vmem:[#allocation9] sm:$0xff]
    %v85 = vld [vmem:[#allocation9 + $0x8] sm:$0xff]
    %v86 = vld [vmem:[#allocation9 + $0x10] sm:$0xff]
    %v87 = vld [vmem:[#allocation9 + $0x18] sm:$0xff]
    %v88 = vld [vmem:[#allocation9 + $0x20] sm:$0xff]
    %v89 = vld [vmem:[#allocation9 + $0x28] sm:$0xff]
    %v90 = vld [vmem:[#allocation9 + $0x30] sm:$0xff]
    %v91 = vld [vmem:[#allocation9 + $0x38] sm:$0xff]
    %v92 = vld [vmem:[#allocation9 + $0x40] sm:$0xff]
    %v93 = vld [vmem:[#allocation9 + $0x48] sm:$0xff]
    %v94 = vld [vmem:[#allocation9 + $0x50] sm:$0xff]
    %v95 = vld [vmem:[#allocation9 + $0x58] sm:$0xff]
    %v96 = vld [vmem:[#allocation9 + $0x60] sm:$0xff]
    %v97 = vld [vmem:[#allocation9 + $0x68] sm:$0xff]
    %v98 = vld [vmem:[#allocation9 + $0x70] sm:$0xff]
    %v99 = vld [vmem:[#allocation9 + $0x78] sm:$0xff]
    %100 = vmatprep.subr.mxu0 0.0
    %101 = vmatpush1.msra.mxu0 %v99
    %102 = vmatprep.subr.mxu0 0.0
    %103 = vmatpush1.msra.mxu0 %v98
    %104 = vmatprep.subr.mxu0 0.0
    %105 = vmatpush1.msra.mxu0 %v97
    %106 = vmatprep.subr.mxu0 0.0
    %107 = vmatpush1.msra.mxu0 %v96
    %108 = vmatprep.subr.mxu0 0.0
    %109 = vmatpush1.msra.mxu0 %v95
    %110 = vmatprep.subr.mxu0 0.0
    %111 = vmatpush1.msra.mxu0 %v94
    %112 = vmatprep.subr.mxu0 0.0
    %113 = vmatpush1.msra.mxu0 %v93
    %114 = vmatprep.subr.mxu0 0.0
    %115 = vmatpush1.msra.mxu0 %v92
    %116 = vmatprep.subr.mxu0 0.0
    %117 = vmatpush1.msra.mxu0 %v91
    %118 = vmatprep.subr.mxu0 0.0
    %119 = vmatpush1.msra.mxu0 %v90
    %120 = vmatprep.subr.mxu0 0.0
    %121 = vmatpush1.msra.mxu0 %v89
    %122 = vmatprep.subr.mxu0 0.0
    %123 = vmatpush1.msra.mxu0 %v88
    %124 = vmatprep.subr.mxu0 0.0
    %125 = vmatpush1.msra.mxu0 %v87
    %126 = vmatprep.subr.mxu0 0.0
    %127 = vmatpush1.msra.mxu0 %v86
    %128 = vmatprep.subr.mxu0 0.0
    %129 = vmatpush1.msra.mxu0 %v85
    %130 = vmatprep.subr.mxu0 0.0
    %131 = vmatpush1.msra.mxu0 %v84
    %132 = vmatprep.subr.mxu0 0.0
    %133 = vmatpush2.msra.mxu0 0.0
    %134 = vmatprep.subr.mxu0 0.0
    %135 = vmatpush2.msra.mxu0 0.0
    %136 = vmatprep.subr.mxu0 0.0
    %137 = vmatpush2.msra.mxu0 0.0
    %138 = vmatprep.subr.mxu0 0.0
    %139 = vmatpush2.msra.mxu0 0.0
    %140 = vmatprep.subr.mxu0 0.0
    %141 = vmatpush2.msra.mxu0 0.0
    %142 = vmatprep.subr.mxu0 0.0
    %143 = vmatpush2.msra.mxu0 0.0
    %144 = vmatprep.subr.mxu0 0.0
    %145 = vmatpush2.msra.mxu0 0.0
    %146 = vmatprep.subr.mxu0 0.0
    %147 = vmatpush2.msra.mxu0 0.0
    %148 = vmatprep.subr.mxu0 0.0
    %149 = vmatpush2.msra.mxu0 0.0
    %150 = vmatprep.subr.mxu0 0.0
    %151 = vmatpush2.msra.mxu0 0.0
    %152 = vmatprep.subr.mxu0 0.0
    %153 = vmatpush2.msra.mxu0 0.0
    %154 = vmatprep.subr.mxu0 0.0
    %155 = vmatpush2.msra.mxu0 0.0
    %156 = vmatprep.subr.mxu0 0.0
    %157 = vmatpush2.msra.mxu0 0.0
    %158 = vmatprep.subr.mxu0 0.0
    %159 = vmatpush2.msra.mxu0 0.0
    %160 = vmatprep.subr.mxu0 0.0
    %161 = vmatpush2.msra.mxu0 0.0
    %162 = vmatprep.subr.mxu0 0.0
    %163 = vmatpush2.msra.mxu0 0.0
    %164 = vmatprep.mubr.f32.mxu0 0.0
    %165 = vmatmul.mubr.f32.gmra.mxu0 %v82
    %v166 = vpop.f32.mrf.mxu0
    %v167 = vadd.f32 0.0, %v166
    %v168 = vpop.f32.mrf.mxu0
    %169 = vdwg.mxu0
    %v170 = vadd.f32 %v83, %v167
    %v171 = vmul.f32 %v170, 0.5
    %v172 = vtanh.pop %v171
    %v173 = vmul.f32 %v172, 0.5
    %v174 = vadd.f32 %v173, 0.5
    %v176 = vlaneseq
    %v177 = vshrl.u32 %v176, 7
    %v178 = vsub.s32 0, %v177
    %v179 = vrot.slane %v79, %v178
    %v181 = vadd.f32 %v170, %v179
    %v182 = vtanh.pop %v181
    %v183 = vmul.f32 %v174, %v82
    %v184 = vsub.f32 1.0, %v174
    %v185 = vstv %s80
    %v186 = vmul.f32 %v185, %v184
    %v187 = vstv %s81
    %v188 = vadd.f32 %v186, %v187
    %v189 = vmul.f32 %v188, %v182
    %v190 = vadd.f32 %v183, %v189
    %v192 = vcombine.high %v190, %v190
    %v194 = vunpack.c.l.s4 1966171168
    %v195 = vunpack.c.0.s8 %v194
    %v196 = vlaneseq
    %v197 = vshrl.u32 %v196, 7
    %v198 = vsub.s32 %v195, %v197
    %v199 = vrot.slane %v190, %v198
    %v201 = vunpack.c.l.s4 1966171168
    %v202 = vunpack.c.0.s8 %v201
    %v203 = vlaneseq
    %v204 = vshrl.u32 %v203, 7
    %v205 = vsub.s32 %v202, %v204
    %v206 = vrot.slane %v192, %v205
    %v207 = vcombine.high %v199, %v199
    %v208 = vcombine.high %v206, %v206
    %v210 = vunpack.c.l.s4 1966171168
    %v211 = vunpack.c.0.s8 %v210
    %v212 = vlaneseq
    %v213 = vshrl.u32 %v212, 7
    %v214 = vsub.s32 %v211, %v213
    %v215 = vrot.slane %v199, %v214
    %v217 = vunpack.c.l.s4 1966171168
    %v218 = vunpack.c.0.s8 %v217
    %v219 = vlaneseq
    %v220 = vshrl.u32 %v219, 7
    %v221 = vsub.s32 %v218, %v220
    %v222 = vrot.slane %v206, %v221
    %v224 = vunpack.c.l.s4 1966171168
    %v225 = vunpack.c.0.s8 %v224
    %v226 = vlaneseq
    %v227 = vshrl.u32 %v226, 7
    %v228 = vsub.s32 %v225, %v227
    %v229 = vrot.slane %v207, %v228
    %v231 = vunpack.c.l.s4 1966171168
    %v232 = vunpack.c.0.s8 %v231
    %v233 = vlaneseq
    %v234 = vshrl.u32 %v233, 7
    %v235 = vsub.s32 %v232, %v234
    %v236 = vrot.slane %v208, %v235
    %v237 = vcombine.high %v215, %v215
    %v238 = vcombine.high %v222, %v222
    %v239 = vcombine.high %v229, %v229
    %v240 = vcombine.high %v236, %v236
    %249 = vst [vmem:[#allocation11] sm:$0x1] %v215
    %250 = vst [vmem:[#allocation11 + $0x8] sm:$0x1] %v229
    %251 = vst [vmem:[#allocation11 + $0x10] sm:$0x1] %v237
    %252 = vst [vmem:[#allocation11 + $0x18] sm:$0x1] %v239
    %253 = vst [vmem:[#allocation11 + $0x20] sm:$0x1] %v222
    %254 = vst [vmem:[#allocation11 + $0x28] sm:$0x1] %v236
    %255 = vst [vmem:[#allocation11 + $0x30] sm:$0x1] %v238
    %256 = vst [vmem:[#allocation11 + $0x38] sm:$0x1] %v240
    %s257 = scalar_lea.vmem [#allocation3], 8
    %v258 = vld [vmem:[%s257] sm:$0xff]
    %v259 = vld [vmem:[#allocation9] sm:$0xff]
    %v260 = vld [vmem:[#allocation9 + $0x8] sm:$0xff]
    %v261 = vld [vmem:[#allocation9 + $0x10] sm:$0xff]
    %v262 = vld [vmem:[#allocation9 + $0x18] sm:$0xff]
    %v263 = vld [vmem:[#allocation9 + $0x20] sm:$0xff]
    %v264 = vld [vmem:[#allocation9 + $0x28] sm:$0xff]
    %v265 = vld [vmem:[#allocation9 + $0x30] sm:$0xff]
    %v266 = vld [vmem:[#allocation9 + $0x38] sm:$0xff]
    %v267 = vld [vmem:[#allocation9 + $0x40] sm:$0xff]
    %v268 = vld [vmem:[#allocation9 + $0x48] sm:$0xff]
    %v269 = vld [vmem:[#allocation9 + $0x50] sm:$0xff]
    %v270 = vld [vmem:[#allocation9 + $0x58] sm:$0xff]
    %v271 = vld [vmem:[#allocation9 + $0x60] sm:$0xff]
    %v272 = vld [vmem:[#allocation9 + $0x68] sm:$0xff]
    %v273 = vld [vmem:[#allocation9 + $0x70] sm:$0xff]
    %v274 = vld [vmem:[#allocation9 + $0x78] sm:$0xff]
    %275 = vmatprep.subr.mxu0 0.0
    %276 = vmatpush1.msra.mxu0 %v274
    %277 = vmatprep.subr.mxu0 0.0
    %278 = vmatpush1.msra.mxu0 %v273
    %279 = vmatprep.subr.mxu0 0.0
    %280 = vmatpush1.msra.mxu0 %v272
    %281 = vmatprep.subr.mxu0 0.0
    %282 = vmatpush1.msra.mxu0 %v271
    %283 = vmatprep.subr.mxu0 0.0
    %284 = vmatpush1.msra.mxu0 %v270
    %285 = vmatprep.subr.mxu0 0.0
    %286 = vmatpush1.msra.mxu0 %v269
    %287 = vmatprep.subr.mxu0 0.0
    %288 = vmatpush1.msra.mxu0 %v268
    %289 = vmatprep.subr.mxu0 0.0
    %290 = vmatpush1.msra.mxu0 %v267
    %291 = vmatprep.subr.mxu0 0.0
    %292 = vmatpush1.msra.mxu0 %v266
    %293 = vmatprep.subr.mxu0 0.0
    %294 = vmatpush1.msra.mxu0 %v265
    %295 = vmatprep.subr.mxu0 0.0
    %296 = vmatpush1.msra.mxu0 %v264
    %297 = vmatprep.subr.mxu0 0.0
    %298 = vmatpush1.msra.mxu0 %v263
    %299 = vmatprep.subr.mxu0 0.0
    %300 = vmatpush1.msra.mxu0 %v262
    %301 = vmatprep.subr.mxu0 0.0
    %302 = vmatpush1.msra.mxu0 %v261
    %303 = vmatprep.subr.mxu0 0.0
    %304 = vmatpush1.msra.mxu0 %v260
    %305 = vmatprep.subr.mxu0 0.0
    %306 = vmatpush1.msra.mxu0 %v259
    %307 = vmatprep.subr.mxu0 0.0
    %308 = vmatpush2.msra.mxu0 0.0
    %309 = vmatprep.subr.mxu0 0.0
    %310 = vmatpush2.msra.mxu0 0.0
    %311 = vmatprep.subr.mxu0 0.0
    %312 = vmatpush2.msra.mxu0 0.0
    %313 = vmatprep.subr.mxu0 0.0
    %314 = vmatpush2.msra.mxu0 0.0
    %315 = vmatprep.subr.mxu0 0.0
    %316 = vmatpush2.msra.mxu0 0.0
    %317 = vmatprep.subr.mxu0 0.0
    %318 = vmatpush2.msra.mxu0 0.0
    %319 = vmatprep.subr.mxu0 0.0
    %320 = vmatpush2.msra.mxu0 0.0
    %321 = vmatprep.subr.mxu0 0.0
    %322 = vmatpush2.msra.mxu0 0.0
    %323 = vmatprep.subr.mxu0 0.0
    %324 = vmatpush2.msra.mxu0 0.0
    %325 = vmatprep.subr.mxu0 0.0
    %326 = vmatpush2.msra.mxu0 0.0
    %327 = vmatprep.subr.mxu0 0.0
    %328 = vmatpush2.msra.mxu0 0.0
    %329 = vmatprep.subr.mxu0 0.0
    %330 = vmatpush2.msra.mxu0 0.0
    %331 = vmatprep.subr.mxu0 0.0
    %332 = vmatpush2.msra.mxu0 0.0
    %333 = vmatprep.subr.mxu0 0.0
    %334 = vmatpush2.msra.mxu0 0.0
    %335 = vmatprep.subr.mxu0 0.0
    %336 = vmatpush2.msra.mxu0 0.0
    %337 = vmatprep.subr.mxu0 0.0
    %338 = vmatpush2.msra.mxu0 0.0
    %339 = vmatprep.mubr.f32.mxu0 0.0
    %340 = vmatmul.mubr.f32.gmra.mxu0 %v190
    %v341 = vpop.f32.mrf.mxu0
    %v342 = vadd.f32 0.0, %v341
    %v343 = vpop.f32.mrf.mxu0
    %344 = vdwg.mxu0
    %v345 = vadd.f32 %v258, %v342
    %v346 = vmul.f32 %v345, 0.5
    %v347 = vtanh.pop %v346
    %v348 = vmul.f32 %v347, 0.5
    %v349 = vadd.f32 %v348, 0.5
    %v350 = vadd.f32 %v345, %v179
    %v351 = vtanh.pop %v350
    %v352 = vmul.f32 %v349, %v190
    %v353 = vsub.f32 1.0, %v349
    %v354 = vmul.f32 %v185, %v353
    %v355 = vadd.f32 %v354, %v187
    %v356 = vmul.f32 %v355, %v351
    %v357 = vadd.f32 %v352, %v356
    %v359 = vcombine.high %v357, %v357
    %v361 = vunpack.c.l.s4 1966171168
    %v362 = vunpack.c.0.s8 %v361
    %v363 = vlaneseq
    %v364 = vshrl.u32 %v363, 7
    %v365 = vsub.s32 %v362, %v364
    %v366 = vrot.slane %v357, %v365
    %v368 = vunpack.c.l.s4 1966171168
    %v369 = vunpack.c.0.s8 %v368
    %v370 = vlaneseq
    %v371 = vshrl.u32 %v370, 7
    %v372 = vsub.s32 %v369, %v371
    %v373 = vrot.slane %v359, %v372
    %v374 = vcombine.high %v366, %v366
    %v375 = vcombine.high %v373, %v373
    %v377 = vunpack.c.l.s4 1966171168
    %v378 = vunpack.c.0.s8 %v377
    %v379 = vlaneseq
    %v380 = vshrl.u32 %v379, 7
    %v381 = vsub.s32 %v378, %v380
    %v382 = vrot.slane %v366, %v381
    %v384 = vunpack.c.l.s4 1966171168
    %v385 = vunpack.c.0.s8 %v384
    %v386 = vlaneseq
    %v387 = vshrl.u32 %v386, 7
    %v388 = vsub.s32 %v385, %v387
    %v389 = vrot.slane %v373, %v388
    %v391 = vunpack.c.l.s4 1966171168
    %v392 = vunpack.c.0.s8 %v391
    %v393 = vlaneseq
    %v394 = vshrl.u32 %v393, 7
    %v395 = vsub.s32 %v392, %v394
    %v396 = vrot.slane %v374, %v395
    %v398 = vunpack.c.l.s4 1966171168
    %v399 = vunpack.c.0.s8 %v398
    %v400 = vlaneseq
    %v401 = vshrl.u32 %v400, 7
    %v402 = vsub.s32 %v399, %v401
    %v403 = vrot.slane %v375, %v402
    %v404 = vcombine.high %v382, %v382
    %v405 = vcombine.high %v389, %v389
    %v406 = vcombine.high %v396, %v396
    %v407 = vcombine.high %v403, %v403
    %416 = vst [vmem:[#allocation11 + $0x1] sm:$0x1] %v382
    %417 = vst [vmem:[#allocation11 + $0x9] sm:$0x1] %v396
    %418 = vst [vmem:[#allocation11 + $0x11] sm:$0x1] %v404
    %419 = vst [vmem:[#allocation11 + $0x19] sm:$0x1] %v406
    %420 = vst [vmem:[#allocation11 + $0x21] sm:$0x1] %v389
    %421 = vst [vmem:[#allocation11 + $0x29] sm:$0x1] %v403
    %422 = vst [vmem:[#allocation11 + $0x31] sm:$0x1] %v405
    %423 = vst [vmem:[#allocation11 + $0x39] sm:$0x1] %v407
    %s424 = scalar_lea.vmem [#allocation3], 16
    %v425 = vld [vmem:[%s424] sm:$0xff]
    %v426 = vld [vmem:[#allocation9] sm:$0xff]
    %v427 = vld [vmem:[#allocation9 + $0x8] sm:$0xff]
    %v428 = vld [vmem:[#allocation9 + $0x10] sm:$0xff]
    %v429 = vld [vmem:[#allocation9 + $0x18] sm:$0xff]
    %v430 = vld [vmem:[#allocation9 + $0x20] sm:$0xff]
    %v431 = vld [vmem:[#allocation9 + $0x28] sm:$0xff]
    %v432 = vld [vmem:[#allocation9 + $0x30] sm:$0xff]
    %v433 = vld [vmem:[#allocation9 + $0x38] sm:$0xff]
    %v434 = vld [vmem:[#allocation9 + $0x40] sm:$0xff]
    %v435 = vld [vmem:[#allocation9 + $0x48] sm:$0xff]
    %v436 = vld [vmem:[#allocation9 + $0x50] sm:$0xff]
    %v437 = vld [vmem:[#allocation9 + $0x58] sm:$0xff]
    %v438 = vld [vmem:[#allocation9 + $0x60] sm:$0xff]
    %v439 = vld [vmem:[#allocation9 + $0x68] sm:$0xff]
    %v440 = vld [vmem:[#allocation9 + $0x70] sm:$0xff]
    %v441 = vld [vmem:[#allocation9 + $0x78] sm:$0xff]
    %442 = vmatprep.subr.mxu0 0.0
    %443 = vmatpush1.msra.mxu0 %v441
    %444 = vmatprep.subr.mxu0 0.0
    %445 = vmatpush1.msra.mxu0 %v440
    %446 = vmatprep.subr.mxu0 0.0
    %447 = vmatpush1.msra.mxu0 %v439
    %448 = vmatprep.subr.mxu0 0.0
    %449 = vmatpush1.msra.mxu0 %v438
    %450 = vmatprep.subr.mxu0 0.0
    %451 = vmatpush1.msra.mxu0 %v437
    %452 = vmatprep.subr.mxu0 0.0
    %453 = vmatpush1.msra.mxu0 %v436
    %454 = vmatprep.subr.mxu0 0.0
    %455 = vmatpush1.msra.mxu0 %v435
    %456 = vmatprep.subr.mxu0 0.0
    %457 = vmatpush1.msra.mxu0 %v434
    %458 = vmatprep.subr.mxu0 0.0
    %459 = vmatpush1.msra.mxu0 %v433
    %460 = vmatprep.subr.mxu0 0.0
    %461 = vmatpush1.msra.mxu0 %v432
    %462 = vmatprep.subr.mxu0 0.0
    %463 = vmatpush1.msra.mxu0 %v431
    %464 = vmatprep.subr.mxu0 0.0
    %465 = vmatpush1.msra.mxu0 %v430
    %466 = vmatprep.subr.mxu0 0.0
    %467 = vmatpush1.msra.mxu0 %v429
    %468 = vmatprep.subr.mxu0 0.0
    %469 = vmatpush1.msra.mxu0 %v428
    %470 = vmatprep.subr.mxu0 0.0
    %471 = vmatpush1.msra.mxu0 %v427
    %472 = vmatprep.subr.mxu0 0.0
    %473 = vmatpush1.msra.mxu0 %v426
    %474 = vmatprep.subr.mxu0 0.0
    %475 = vmatpush2.msra.mxu0 0.0
    %476 = vmatprep.subr.mxu0 0.0
    %477 = vmatpush2.msra.mxu0 0.0
    %478 = vmatprep.subr.mxu0 0.0
    %479 = vmatpush2.msra.mxu0 0.0
    %480 = vmatprep.subr.mxu0 0.0
    %481 = vmatpush2.msra.mxu0 0.0
    %482 = vmatprep.subr.mxu0 0.0
    %483 = vmatpush2.msra.mxu0 0.0
    %484 = vmatprep.subr.mxu0 0.0
    %485 = vmatpush2.msra.mxu0 0.0
    %486 = vmatprep.subr.mxu0 0.0
    %487 = vmatpush2.msra.mxu0 0.0
    %488 = vmatprep.subr.mxu0 0.0
    %489 = vmatpush2.msra.mxu0 0.0
    %490 = vmatprep.subr.mxu0 0.0
    %491 = vmatpush2.msra.mxu0 0.0
    %492 = vmatprep.subr.mxu0 0.0
    %493 = vmatpush2.msra.mxu0 0.0
    %494 = vmatprep.subr.mxu0 0.0
    %495 = vmatpush2.msra.mxu0 0.0
    %496 = vmatprep.subr.mxu0 0.0
    %497 = vmatpush2.msra.mxu0 0.0
    %498 = vmatprep.subr.mxu0 0.0
    %499 = vmatpush2.msra.mxu0 0.0
    %500 = vmatprep.subr.mxu0 0.0
    %501 = vmatpush2.msra.mxu0 0.0
    %502 = vmatprep.subr.mxu0 0.0
    %503 = vmatpush2.msra.mxu0 0.0
    %504 = vmatprep.subr.mxu0 0.0
    %505 = vmatpush2.msra.mxu0 0.0
    %506 = vmatprep.mubr.f32.mxu0 0.0
    %507 = vmatmul.mubr.f32.gmra.mxu0 %v357
    %v508 = vpop.f32.mrf.mxu0
    %v509 = vadd.f32 0.0, %v508
    %v510 = vpop.f32.mrf.mxu0
    %511 = vdwg.mxu0
    %v512 = vadd.f32 %v425, %v509
    %v513 = vmul.f32 %v512, 0.5
    %v514 = vtanh.pop %v513
    %v515 = vmul.f32 %v514, 0.5
    %v516 = vadd.f32 %v515, 0.5
    %v517 = vadd.f32 %v512, %v179
    %v518 = vtanh.pop %v517
    %v519 = vmul.f32 %v516, %v357
    %v520 = vsub.f32 1.0, %v516
    %v521 = vmul.f32 %v185, %v520
    %v522 = vadd.f32 %v521, %v187
    %v523 = vmul.f32 %v522, %v518
    %v524 = vadd.f32 %v519, %v523
    %v526 = vcombine.high %v524, %v524
    %v528 = vunpack.c.l.s4 1966171168
    %v529 = vunpack.c.0.s8 %v528
    %v530 = vlaneseq
    %v531 = vshrl.u32 %v530, 7
    %v532 = vsub.s32 %v529, %v531
    %v533 = vrot.slane %v524, %v532
    %v535 = vunpack.c.l.s4 1966171168
    %v536 = vunpack.c.0.s8 %v535
    %v537 = vlaneseq
    %v538 = vshrl.u32 %v537, 7
    %v539 = vsub.s32 %v536, %v538
    %v540 = vrot.slane %v526, %v539
    %v541 = vcombine.high %v533, %v533
    %v542 = vcombine.high %v540, %v540
    %v544 = vunpack.c.l.s4 1966171168
    %v545 = vunpack.c.0.s8 %v544
    %v546 = vlaneseq
    %v547 = vshrl.u32 %v546, 7
    %v548 = vsub.s32 %v545, %v547
    %v549 = vrot.slane %v533, %v548
    %v551 = vunpack.c.l.s4 1966171168
    %v552 = vunpack.c.0.s8 %v551
    %v553 = vlaneseq
    %v554 = vshrl.u32 %v553, 7
    %v555 = vsub.s32 %v552, %v554
    %v556 = vrot.slane %v540, %v555
    %v558 = vunpack.c.l.s4 1966171168
    %v559 = vunpack.c.0.s8 %v558
    %v560 = vlaneseq
    %v561 = vshrl.u32 %v560, 7
    %v562 = vsub.s32 %v559, %v561
    %v563 = vrot.slane %v541, %v562
    %v565 = vunpack.c.l.s4 1966171168
    %v566 = vunpack.c.0.s8 %v565
    %v567 = vlaneseq
    %v568 = vshrl.u32 %v567, 7
    %v569 = vsub.s32 %v566, %v568
    %v570 = vrot.slane %v542, %v569
    %v571 = vcombine.high %v549, %v549
    %v572 = vcombine.high %v556, %v556
    %v573 = vcombine.high %v563, %v563
    %v574 = vcombine.high %v570, %v570
    %583 = vst [vmem:[#allocation11 + $0x2] sm:$0x1] %v549
    %584 = vst [vmem:[#allocation11 + $0xa] sm:$0x1] %v563
    %585 = vst [vmem:[#allocation11 + $0x12] sm:$0x1] %v571
    %586 = vst [vmem:[#allocation11 + $0x1a] sm:$0x1] %v573
    %587 = vst [vmem:[#allocation11 + $0x22] sm:$0x1] %v556
    %588 = vst [vmem:[#allocation11 + $0x2a] sm:$0x1] %v570
    %589 = vst [vmem:[#allocation11 + $0x32] sm:$0x1] %v572
    %590 = vst [vmem:[#allocation11 + $0x3a] sm:$0x1] %v574
    %s591 = scalar_lea.vmem [#allocation3], 24
    %v592 = vld [vmem:[%s591] sm:$0xff]
    %v593 = vld [vmem:[#allocation9] sm:$0xff]
    %v594 = vld [vmem:[#allocation9 + $0x8] sm:$0xff]
    %v595 = vld [vmem:[#allocation9 + $0x10] sm:$0xff]
    %v596 = vld [vmem:[#allocation9 + $0x18] sm:$0xff]
    %v597 = vld [vmem:[#allocation9 + $0x20] sm:$0xff]
    %v598 = vld [vmem:[#allocation9 + $0x28] sm:$0xff]
    %v599 = vld [vmem:[#allocation9 + $0x30] sm:$0xff]
    %v600 = vld [vmem:[#allocation9 + $0x38] sm:$0xff]
    %v601 = vld [vmem:[#allocation9 + $0x40] sm:$0xff]
    %v602 = vld [vmem:[#allocation9 + $0x48] sm:$0xff]
    %v603 = vld [vmem:[#allocation9 + $0x50] sm:$0xff]
    %v604 = vld [vmem:[#allocation9 + $0x58] sm:$0xff]
    %v605 = vld [vmem:[#allocation9 + $0x60] sm:$0xff]
    %v606 = vld [vmem:[#allocation9 + $0x68] sm:$0xff]
    %v607 = vld [vmem:[#allocation9 + $0x70] sm:$0xff]
    %v608 = vld [vmem:[#allocation9 + $0x78] sm:$0xff]
    %609 = vmatprep.subr.mxu0 0.0
    %610 = vmatpush1.msra.mxu0 %v608
    %611 = vmatprep.subr.mxu0 0.0
    %612 = vmatpush1.msra.mxu0 %v607
    %613 = vmatprep.subr.mxu0 0.0
    %614 = vmatpush1.msra.mxu0 %v606
    %615 = vmatprep.subr.mxu0 0.0
    %616 = vmatpush1.msra.mxu0 %v605
    %617 = vmatprep.subr.mxu0 0.0
    %618 = vmatpush1.msra.mxu0 %v604
    %619 = vmatprep.subr.mxu0 0.0
    %620 = vmatpush1.msra.mxu0 %v603
    %621 = vmatprep.subr.mxu0 0.0
    %622 = vmatpush1.msra.mxu0 %v602
    %623 = vmatprep.subr.mxu0 0.0
    %624 = vmatpush1.msra.mxu0 %v601
    %625 = vmatprep.subr.mxu0 0.0
    %626 = vmatpush1.msra.mxu0 %v600
    %627 = vmatprep.subr.mxu0 0.0
    %628 = vmatpush1.msra.mxu0 %v599
    %629 = vmatprep.subr.mxu0 0.0
    %630 = vmatpush1.msra.mxu0 %v598
    %631 = vmatprep.subr.mxu0 0.0
    %632 = vmatpush1.msra.mxu0 %v597
    %633 = vmatprep.subr.mxu0 0.0
    %634 = vmatpush1.msra.mxu0 %v596
    %635 = vmatprep.subr.mxu0 0.0
    %636 = vmatpush1.msra.mxu0 %v595
    %637 = vmatprep.subr.mxu0 0.0
    %638 = vmatpush1.msra.mxu0 %v594
    %639 = vmatprep.subr.mxu0 0.0
    %640 = vmatpush1.msra.mxu0 %v593
    %641 = vmatprep.subr.mxu0 0.0
    %642 = vmatpush2.msra.mxu0 0.0
    %643 = vmatprep.subr.mxu0 0.0
    %644 = vmatpush2.msra.mxu0 0.0
    %645 = vmatprep.subr.mxu0 0.0
    %646 = vmatpush2.msra.mxu0 0.0
    %647 = vmatprep.subr.mxu0 0.0
    %648 = vmatpush2.msra.mxu0 0.0
    %649 = vmatprep.subr.mxu0 0.0
    %650 = vmatpush2.msra.mxu0 0.0
    %651 = vmatprep.subr.mxu0 0.0
    %652 = vmatpush2.msra.mxu0 0.0
    %653 = vmatprep.subr.mxu0 0.0
    %654 = vmatpush2.msra.mxu0 0.0
    %655 = vmatprep.subr.mxu0 0.0
    %656 = vmatpush2.msra.mxu0 0.0
    %657 = vmatprep.subr.mxu0 0.0
    %658 = vmatpush2.msra.mxu0 0.0
    %659 = vmatprep.subr.mxu0 0.0
    %660 = vmatpush2.msra.mxu0 0.0
    %661 = vmatprep.subr.mxu0 0.0
    %662 = vmatpush2.msra.mxu0 0.0
    %663 = vmatprep.subr.mxu0 0.0
    %664 = vmatpush2.msra.mxu0 0.0
    %665 = vmatprep.subr.mxu0 0.0
    %666 = vmatpush2.msra.mxu0 0.0
    %667 = vmatprep.subr.mxu0 0.0
    %668 = vmatpush2.msra.mxu0 0.0
    %669 = vmatprep.subr.mxu0 0.0
    %670 = vmatpush2.msra.mxu0 0.0
    %671 = vmatprep.subr.mxu0 0.0
    %672 = vmatpush2.msra.mxu0 0.0
    %673 = vmatprep.mubr.f32.mxu0 0.0
    %674 = vmatmul.mubr.f32.gmra.mxu0 %v524
    %v675 = vpop.f32.mrf.mxu0
    %v676 = vadd.f32 0.0, %v675
    %v677 = vpop.f32.mrf.mxu0
    %678 = vdwg.mxu0
    %v679 = vadd.f32 %v592, %v676
    %v680 = vmul.f32 %v679, 0.5
    %v681 = vtanh.pop %v680
    %v682 = vmul.f32 %v681, 0.5
    %v683 = vadd.f32 %v682, 0.5
    %v684 = vadd.f32 %v679, %v179
    %v685 = vtanh.pop %v684
    %v686 = vmul.f32 %v683, %v524
    %v687 = vsub.f32 1.0, %v683
    %v688 = vmul.f32 %v185, %v687
    %v689 = vadd.f32 %v688, %v187
    %v690 = vmul.f32 %v689, %v685
    %v691 = vadd.f32 %v686, %v690
    %v693 = vcombine.high %v691, %v691
    %v695 = vunpack.c.l.s4 1966171168
    %v696 = vunpack.c.0.s8 %v695
    %v697 = vlaneseq
    %v698 = vshrl.u32 %v697, 7
    %v699 = vsub.s32 %v696, %v698
    %v700 = vrot.slane %v691, %v699
    %v702 = vunpack.c.l.s4 1966171168
    %v703 = vunpack.c.0.s8 %v702
    %v704 = vlaneseq
    %v705 = vshrl.u32 %v704, 7
    %v706 = vsub.s32 %v703, %v705
    %v707 = vrot.slane %v693, %v706
    %v708 = vcombine.high %v700, %v700
    %v709 = vcombine.high %v707, %v707
    %v711 = vunpack.c.l.s4 1966171168
    %v712 = vunpack.c.0.s8 %v711
    %v713 = vlaneseq
    %v714 = vshrl.u32 %v713, 7
    %v715 = vsub.s32 %v712, %v714
    %v716 = vrot.slane %v700, %v715
    %v718 = vunpack.c.l.s4 1966171168
    %v719 = vunpack.c.0.s8 %v718
    %v720 = vlaneseq
    %v721 = vshrl.u32 %v720, 7
    %v722 = vsub.s32 %v719, %v721
    %v723 = vrot.slane %v707, %v722
    %v725 = vunpack.c.l.s4 1966171168
    %v726 = vunpack.c.0.s8 %v725
    %v727 = vlaneseq
    %v728 = vshrl.u32 %v727, 7
    %v729 = vsub.s32 %v726, %v728
    %v730 = vrot.slane %v708, %v729
    %v732 = vunpack.c.l.s4 1966171168
    %v733 = vunpack.c.0.s8 %v732
    %v734 = vlaneseq
    %v735 = vshrl.u32 %v734, 7
    %v736 = vsub.s32 %v733, %v735
    %v737 = vrot.slane %v709, %v736
    %v738 = vcombine.high %v716, %v716
    %v739 = vcombine.high %v723, %v723
    %v740 = vcombine.high %v730, %v730
    %v741 = vcombine.high %v737, %v737
    %750 = vst [vmem:[#allocation11 + $0x3] sm:$0x1] %v716
    %751 = vst [vmem:[#allocation11 + $0xb] sm:$0x1] %v730
    %752 = vst [vmem:[#allocation11 + $0x13] sm:$0x1] %v738
    %753 = vst [vmem:[#allocation11 + $0x1b] sm:$0x1] %v740
    %754 = vst [vmem:[#allocation11 + $0x23] sm:$0x1] %v723
    %755 = vst [vmem:[#allocation11 + $0x2b] sm:$0x1] %v737
    %756 = vst [vmem:[#allocation11 + $0x33] sm:$0x1] %v739
    %757 = vst [vmem:[#allocation11 + $0x3b] sm:$0x1] %v741
    %s758 = scalar_lea.vmem [#allocation3], 32
    %v759 = vld [vmem:[%s758] sm:$0xff]
    %v760 = vld [vmem:[#allocation9] sm:$0xff]
    %v761 = vld [vmem:[#allocation9 + $0x8] sm:$0xff]
    %v762 = vld [vmem:[#allocation9 + $0x10] sm:$0xff]
    %v763 = vld [vmem:[#allocation9 + $0x18] sm:$0xff]
    %v764 = vld [vmem:[#allocation9 + $0x20] sm:$0xff]
    %v765 = vld [vmem:[#allocation9 + $0x28] sm:$0xff]
    %v766 = vld [vmem:[#allocation9 + $0x30] sm:$0xff]
    %v767 = vld [vmem:[#allocation9 + $0x38] sm:$0xff]
    %v768 = vld [vmem:[#allocation9 + $0x40] sm:$0xff]
    %v769 = vld [vmem:[#allocation9 + $0x48] sm:$0xff]
    %v770 = vld [vmem:[#allocation9 + $0x50] sm:$0xff]
    %v771 = vld [vmem:[#allocation9 + $0x58] sm:$0xff]
    %v772 = vld [vmem:[#allocation9 + $0x60] sm:$0xff]
    %v773 = vld [vmem:[#allocation9 + $0x68] sm:$0xff]
    %v774 = vld [vmem:[#allocation9 + $0x70] sm:$0xff]
    %v775 = vld [vmem:[#allocation9 + $0x78] sm:$0xff]
    %776 = vmatprep.subr.mxu0 0.0
    %777 = vmatpush1.msra.mxu0 %v775
    %778 = vmatprep.subr.mxu0 0.0
    %779 = vmatpush1.msra.mxu0 %v774
    %780 = vmatprep.subr.mxu0 0.0
    %781 = vmatpush1.msra.mxu0 %v773
    %782 = vmatprep.subr.mxu0 0.0
    %783 = vmatpush1.msra.mxu0 %v772
    %784 = vmatprep.subr.mxu0 0.0
    %785 = vmatpush1.msra.mxu0 %v771
    %786 = vmatprep.subr.mxu0 0.0
    %787 = vmatpush1.msra.mxu0 %v770
    %788 = vmatprep.subr.mxu0 0.0
    %789 = vmatpush1.msra.mxu0 %v769
    %790 = vmatprep.subr.mxu0 0.0
    %791 = vmatpush1.msra.mxu0 %v768
    %792 = vmatprep.subr.mxu0 0.0
    %793 = vmatpush1.msra.mxu0 %v767
    %794 = vmatprep.subr.mxu0 0.0
    %795 = vmatpush1.msra.mxu0 %v766
    %796 = vmatprep.subr.mxu0 0.0
    %797 = vmatpush1.msra.mxu0 %v765
    %798 = vmatprep.subr.mxu0 0.0
    %799 = vmatpush1.msra.mxu0 %v764
    %800 = vmatprep.subr.mxu0 0.0
    %801 = vmatpush1.msra.mxu0 %v763
    %802 = vmatprep.subr.mxu0 0.0
    %803 = vmatpush1.msra.mxu0 %v762
    %804 = vmatprep.subr.mxu0 0.0
    %805 = vmatpush1.msra.mxu0 %v761
    %806 = vmatprep.subr.mxu0 0.0
    %807 = vmatpush1.msra.mxu0 %v760
    %808 = vmatprep.subr.mxu0 0.0
    %809 = vmatpush2.msra.mxu0 0.0
    %810 = vmatprep.subr.mxu0 0.0
    %811 = vmatpush2.msra.mxu0 0.0
    %812 = vmatprep.subr.mxu0 0.0
    %813 = vmatpush2.msra.mxu0 0.0
    %814 = vmatprep.subr.mxu0 0.0
    %815 = vmatpush2.msra.mxu0 0.0
    %816 = vmatprep.subr.mxu0 0.0
    %817 = vmatpush2.msra.mxu0 0.0
    %818 = vmatprep.subr.mxu0 0.0
    %819 = vmatpush2.msra.mxu0 0.0
    %820 = vmatprep.subr.mxu0 0.0
    %821 = vmatpush2.msra.mxu0 0.0
    %822 = vmatprep.subr.mxu0 0.0
    %823 = vmatpush2.msra.mxu0 0.0
    %824 = vmatprep.subr.mxu0 0.0
    %825 = vmatpush2.msra.mxu0 0.0
    %826 = vmatprep.subr.mxu0 0.0
    %827 = vmatpush2.msra.mxu0 0.0
    %828 = vmatprep.subr.mxu0 0.0
    %829 = vmatpush2.msra.mxu0 0.0
    %830 = vmatprep.subr.mxu0 0.0
    %831 = vmatpush2.msra.mxu0 0.0
    %832 = vmatprep.subr.mxu0 0.0
    %833 = vmatpush2.msra.mxu0 0.0
    %834 = vmatprep.subr.mxu0 0.0
    %835 = vmatpush2.msra.mxu0 0.0
    %836 = vmatprep.subr.mxu0 0.0
    %837 = vmatpush2.msra.mxu0 0.0
    %838 = vmatprep.subr.mxu0 0.0
    %839 = vmatpush2.msra.mxu0 0.0
    %840 = vmatprep.mubr.f32.mxu0 0.0
    %841 = vmatmul.mubr.f32.gmra.mxu0 %v691
    %v842 = vpop.f32.mrf.mxu0
    %v843 = vadd.f32 0.0, %v842
    %v844 = vpop.f32.mrf.mxu0
    %845 = vdwg.mxu0
    %v846 = vadd.f32 %v759, %v843
    %v847 = vmul.f32 %v846, 0.5
    %v848 = vtanh.pop %v847
    %v849 = vmul.f32 %v848, 0.5
    %v850 = vadd.f32 %v849, 0.5
    %v851 = vadd.f32 %v846, %v179
    %v852 = vtanh.pop %v851
    %v853 = vmul.f32 %v850, %v691
    %v854 = vsub.f32 1.0, %v850
    %v855 = vmul.f32 %v185, %v854
    %v856 = vadd.f32 %v855, %v187
    %v857 = vmul.f32 %v856, %v852
    %v858 = vadd.f32 %v853, %v857
    %v860 = vcombine.high %v858, %v858
    %v862 = vunpack.c.l.s4 1966171168
    %v863 = vunpack.c.0.s8 %v862
    %v864 = vlaneseq
    %v865 = vshrl.u32 %v864, 7
    %v866 = vsub.s32 %v863, %v865
    %v867 = vrot.slane %v858, %v866
    %v869 = vunpack.c.l.s4 1966171168
    %v870 = vunpack.c.0.s8 %v869
    %v871 = vlaneseq
    %v872 = vshrl.u32 %v871, 7
    %v873 = vsub.s32 %v870, %v872
    %v874 = vrot.slane %v860, %v873
    %v875 = vcombine.high %v867, %v867
    %v876 = vcombine.high %v874, %v874
    %v878 = vunpack.c.l.s4 1966171168
    %v879 = vunpack.c.0.s8 %v878
    %v880 = vlaneseq
    %v881 = vshrl.u32 %v880, 7
    %v882 = vsub.s32 %v879, %v881
    %v883 = vrot.slane %v867, %v882
    %v885 = vunpack.c.l.s4 1966171168
    %v886 = vunpack.c.0.s8 %v885
    %v887 = vlaneseq
    %v888 = vshrl.u32 %v887, 7
    %v889 = vsub.s32 %v886, %v888
    %v890 = vrot.slane %v874, %v889
    %v892 = vunpack.c.l.s4 1966171168
    %v893 = vunpack.c.0.s8 %v892
    %v894 = vlaneseq
    %v895 = vshrl.u32 %v894, 7
    %v896 = vsub.s32 %v893, %v895
    %v897 = vrot.slane %v875, %v896
    %v899 = vunpack.c.l.s4 1966171168
    %v900 = vunpack.c.0.s8 %v899
    %v901 = vlaneseq
    %v902 = vshrl.u32 %v901, 7
    %v903 = vsub.s32 %v900, %v902
    %v904 = vrot.slane %v876, %v903
    %v905 = vcombine.high %v883, %v883
    %v906 = vcombine.high %v890, %v890
    %v907 = vcombine.high %v897, %v897
    %v908 = vcombine.high %v904, %v904
    %917 = vst [vmem:[#allocation11 + $0x4] sm:$0x1] %v883
    %918 = vst [vmem:[#allocation11 + $0xc] sm:$0x1] %v897
    %919 = vst [vmem:[#allocation11 + $0x14] sm:$0x1] %v905
    %920 = vst [vmem:[#allocation11 + $0x1c] sm:$0x1] %v907
    %921 = vst [vmem:[#allocation11 + $0x24] sm:$0x1] %v890
    %922 = vst [vmem:[#allocation11 + $0x2c] sm:$0x1] %v904
    %923 = vst [vmem:[#allocation11 + $0x34] sm:$0x1] %v906
    %924 = vst [vmem:[#allocation11 + $0x3c] sm:$0x1] %v908
    %s925 = scalar_lea.vmem [#allocation3], 40
    %v926 = vld [vmem:[%s925] sm:$0xff]
    %v927 = vld [vmem:[#allocation9] sm:$0xff]
    %v928 = vld [vmem:[#allocation9 + $0x8] sm:$0xff]
    %v929 = vld [vmem:[#allocation9 + $0x10] sm:$0xff]
    %v930 = vld [vmem:[#allocation9 + $0x18] sm:$0xff]
    %v931 = vld [vmem:[#allocation9 + $0x20] sm:$0xff]
    %v932 = vld [vmem:[#allocation9 + $0x28] sm:$0xff]
    %v933 = vld [vmem:[#allocation9 + $0x30] sm:$0xff]
    %v934 = vld [vmem:[#allocation9 + $0x38] sm:$0xff]
    %v935 = vld [vmem:[#allocation9 + $0x40] sm:$0xff]
    %v936 = vld [vmem:[#allocation9 + $0x48] sm:$0xff]
    %v937 = vld [vmem:[#allocation9 + $0x50] sm:$0xff]
    %v938 = vld [vmem:[#allocation9 + $0x58] sm:$0xff]
    %v939 = vld [vmem:[#allocation9 + $0x60] sm:$0xff]
    %v940 = vld [vmem:[#allocation9 + $0x68] sm:$0xff]
    %v941 = vld [vmem:[#allocation9 + $0x70] sm:$0xff]
    %v942 = vld [vmem:[#allocation9 + $0x78] sm:$0xff]
    %943 = vmatprep.subr.mxu0 0.0
    %944 = vmatpush1.msra.mxu0 %v942
    %945 = vmatprep.subr.mxu0 0.0
    %946 = vmatpush1.msra.mxu0 %v941
    %947 = vmatprep.subr.mxu0 0.0
    %948 = vmatpush1.msra.mxu0 %v940
    %949 = vmatprep.subr.mxu0 0.0
    %950 = vmatpush1.msra.mxu0 %v939
    %951 = vmatprep.subr.mxu0 0.0
    %952 = vmatpush1.msra.mxu0 %v938
    %953 = vmatprep.subr.mxu0 0.0
    %954 = vmatpush1.msra.mxu0 %v937
    %955 = vmatprep.subr.mxu0 0.0
    %956 = vmatpush1.msra.mxu0 %v936
    %957 = vmatprep.subr.mxu0 0.0
    %958 = vmatpush1.msra.mxu0 %v935
    %959 = vmatprep.subr.mxu0 0.0
    %960 = vmatpush1.msra.mxu0 %v934
    %961 = vmatprep.subr.mxu0 0.0
    %962 = vmatpush1.msra.mxu0 %v933
    %963 = vmatprep.subr.mxu0 0.0
    %964 = vmatpush1.msra.mxu0 %v932
    %965 = vmatprep.subr.mxu0 0.0
    %966 = vmatpush1.msra.mxu0 %v931
    %967 = vmatprep.subr.mxu0 0.0
    %968 = vmatpush1.msra.mxu0 %v930
    %969 = vmatprep.subr.mxu0 0.0
    %970 = vmatpush1.msra.mxu0 %v929
    %971 = vmatprep.subr.mxu0 0.0
    %972 = vmatpush1.msra.mxu0 %v928
    %973 = vmatprep.subr.mxu0 0.0
    %974 = vmatpush1.msra.mxu0 %v927
    %975 = vmatprep.subr.mxu0 0.0
    %976 = vmatpush2.msra.mxu0 0.0
    %977 = vmatprep.subr.mxu0 0.0
    %978 = vmatpush2.msra.mxu0 0.0
    %979 = vmatprep.subr.mxu0 0.0
    %980 = vmatpush2.msra.mxu0 0.0
    %981 = vmatprep.subr.mxu0 0.0
    %982 = vmatpush2.msra.mxu0 0.0
    %983 = vmatprep.subr.mxu0 0.0
    %984 = vmatpush2.msra.mxu0 0.0
    %985 = vmatprep.subr.mxu0 0.0
    %986 = vmatpush2.msra.mxu0 0.0
    %987 = vmatprep.subr.mxu0 0.0
    %988 = vmatpush2.msra.mxu0 0.0
    %989 = vmatprep.subr.mxu0 0.0
    %990 = vmatpush2.msra.mxu0 0.0
    %991 = vmatprep.subr.mxu0 0.0
    %992 = vmatpush2.msra.mxu0 0.0
    %993 = vmatprep.subr.mxu0 0.0
    %994 = vmatpush2.msra.mxu0 0.0
    %995 = vmatprep.subr.mxu0 0.0
    %996 = vmatpush2.msra.mxu0 0.0
    %997 = vmatprep.subr.mxu0 0.0
    %998 = vmatpush2.msra.mxu0 0.0
    %999 = vmatprep.subr.mxu0 0.0
    %1000 = vmatpush2.msra.mxu0 0.0
    %1001 = vmatprep.subr.mxu0 0.0
    %1002 = vmatpush2.msra.mxu0 0.0
    %1003 = vmatprep.subr.mxu0 0.0
    %1004 = vmatpush2.msra.mxu0 0.0
    %1005 = vmatprep.subr.mxu0 0.0
    %1006 = vmatpush2.msra.mxu0 0.0
    %1007 = vmatprep.mubr.f32.mxu0 0.0
    %1008 = vmatmul.mubr.f32.gmra.mxu0 %v858
    %v1009 = vpop.f32.mrf.mxu0
    %v1010 = vadd.f32 0.0, %v1009
    %v1011 = vpop.f32.mrf.mxu0
    %1012 = vdwg.mxu0
    %v1013 = vadd.f32 %v926, %v1010
    %v1014 = vmul.f32 %v1013, 0.5
    %v1015 = vtanh.pop %v1014
    %v1016 = vmul.f32 %v1015, 0.5
    %v1017 = vadd.f32 %v1016, 0.5
    %v1018 = vadd.f32 %v1013, %v179
    %v1019 = vtanh.pop %v1018
    %v1020 = vmul.f32 %v1017, %v858
    %v1021 = vsub.f32 1.0, %v1017
    %v1022 = vmul.f32 %v185, %v1021
    %v1023 = vadd.f32 %v1022, %v187
    %v1024 = vmul.f32 %v1023, %v1019
    %v1025 = vadd.f32 %v1020, %v1024
    %v1027 = vcombine.high %v1025, %v1025
    %v1029 = vunpack.c.l.s4 1966171168
    %v1030 = vunpack.c.0.s8 %v1029
    %v1031 = vlaneseq
    %v1032 = vshrl.u32 %v1031, 7
    %v1033 = vsub.s32 %v1030, %v1032
    %v1034 = vrot.slane %v1025, %v1033
    %v1036 = vunpack.c.l.s4 1966171168
    %v1037 = vunpack.c.0.s8 %v1036
    %v1038 = vlaneseq
    %v1039 = vshrl.u32 %v1038, 7
    %v1040 = vsub.s32 %v1037, %v1039
    %v1041 = vrot.slane %v1027, %v1040
    %v1042 = vcombine.high %v1034, %v1034
    %v1043 = vcombine.high %v1041, %v1041
    %v1045 = vunpack.c.l.s4 1966171168
    %v1046 = vunpack.c.0.s8 %v1045
    %v1047 = vlaneseq
    %v1048 = vshrl.u32 %v1047, 7
    %v1049 = vsub.s32 %v1046, %v1048
    %v1050 = vrot.slane %v1034, %v1049
    %v1052 = vunpack.c.l.s4 1966171168
    %v1053 = vunpack.c.0.s8 %v1052
    %v1054 = vlaneseq
    %v1055 = vshrl.u32 %v1054, 7
    %v1056 = vsub.s32 %v1053, %v1055
    %v1057 = vrot.slane %v1041, %v1056
    %v1059 = vunpack.c.l.s4 1966171168
    %v1060 = vunpack.c.0.s8 %v1059
    %v1061 = vlaneseq
    %v1062 = vshrl.u32 %v1061, 7
    %v1063 = vsub.s32 %v1060, %v1062
    %v1064 = vrot.slane %v1042, %v1063
    %v1066 = vunpack.c.l.s4 1966171168
    %v1067 = vunpack.c.0.s8 %v1066
    %v1068 = vlaneseq
    %v1069 = vshrl.u32 %v1068, 7
    %v1070 = vsub.s32 %v1067, %v1069
    %v1071 = vrot.slane %v1043, %v1070
    %v1072 = vcombine.high %v1050, %v1050
    %v1073 = vcombine.high %v1057, %v1057
    %v1074 = vcombine.high %v1064, %v1064
    %v1075 = vcombine.high %v1071, %v1071
    %1084 = vst [vmem:[#allocation11 + $0x5] sm:$0x1] %v1050
    %1085 = vst [vmem:[#allocation11 + $0xd] sm:$0x1] %v1064
    %1086 = vst [vmem:[#allocation11 + $0x15] sm:$0x1] %v1072
    %1087 = vst [vmem:[#allocation11 + $0x1d] sm:$0x1] %v1074
    %1088 = vst [vmem:[#allocation11 + $0x25] sm:$0x1] %v1057
    %1089 = vst [vmem:[#allocation11 + $0x2d] sm:$0x1] %v1071
    %1090 = vst [vmem:[#allocation11 + $0x35] sm:$0x1] %v1073
    %1091 = vst [vmem:[#allocation11 + $0x3d] sm:$0x1] %v1075
    %s1092 = scalar_lea.vmem [#allocation3], 48
    %v1093 = vld [vmem:[%s1092] sm:$0xff]
    %v1094 = vld [vmem:[#allocation9] sm:$0xff]
    %v1095 = vld [vmem:[#allocation9 + $0x8] sm:$0xff]
    %v1096 = vld [vmem:[#allocation9 + $0x10] sm:$0xff]
    %v1097 = vld [vmem:[#allocation9 + $0x18] sm:$0xff]
    %v1098 = vld [vmem:[#allocation9 + $0x20] sm:$0xff]
    %v1099 = vld [vmem:[#allocation9 + $0x28] sm:$0xff]
    %v1100 = vld [vmem:[#allocation9 + $0x30] sm:$0xff]
    %v1101 = vld [vmem:[#allocation9 + $0x38] sm:$0xff]
    %v1102 = vld [vmem:[#allocation9 + $0x40] sm:$0xff]
    %v1103 = vld [vmem:[#allocation9 + $0x48] sm:$0xff]
    %v1104 = vld [vmem:[#allocation9 + $0x50] sm:$0xff]
    %v1105 = vld [vmem:[#allocation9 + $0x58] sm:$0xff]
    %v1106 = vld [vmem:[#allocation9 + $0x60] sm:$0xff]
    %v1107 = vld [vmem:[#allocation9 + $0x68] sm:$0xff]
    %v1108 = vld [vmem:[#allocation9 + $0x70] sm:$0xff]
    %v1109 = vld [vmem:[#allocation9 + $0x78] sm:$0xff]
    %1110 = vmatprep.subr.mxu0 0.0
    %1111 = vmatpush1.msra.mxu0 %v1109
    %1112 = vmatprep.subr.mxu0 0.0
    %1113 = vmatpush1.msra.mxu0 %v1108
    %1114 = vmatprep.subr.mxu0 0.0
    %1115 = vmatpush1.msra.mxu0 %v1107
    %1116 = vmatprep.subr.mxu0 0.0
    %1117 = vmatpush1.msra.mxu0 %v1106
    %1118 = vmatprep.subr.mxu0 0.0
    %1119 = vmatpush1.msra.mxu0 %v1105
    %1120 = vmatprep.subr.mxu0 0.0
    %1121 = vmatpush1.msra.mxu0 %v1104
    %1122 = vmatprep.subr.mxu0 0.0
    %1123 = vmatpush1.msra.mxu0 %v1103
    %1124 = vmatprep.subr.mxu0 0.0
    %1125 = vmatpush1.msra.mxu0 %v1102
    %1126 = vmatprep.subr.mxu0 0.0
    %1127 = vmatpush1.msra.mxu0 %v1101
    %1128 = vmatprep.subr.mxu0 0.0
    %1129 = vmatpush1.msra.mxu0 %v1100
    %1130 = vmatprep.subr.mxu0 0.0
    %1131 = vmatpush1.msra.mxu0 %v1099
    %1132 = vmatprep.subr.mxu0 0.0
    %1133 = vmatpush1.msra.mxu0 %v1098
    %1134 = vmatprep.subr.mxu0 0.0
    %1135 = vmatpush1.msra.mxu0 %v1097
    %1136 = vmatprep.subr.mxu0 0.0
    %1137 = vmatpush1.msra.mxu0 %v1096
    %1138 = vmatprep.subr.mxu0 0.0
    %1139 = vmatpush1.msra.mxu0 %v1095
    %1140 = vmatprep.subr.mxu0 0.0
    %1141 = vmatpush1.msra.mxu0 %v1094
    %1142 = vmatprep.subr.mxu0 0.0
    %1143 = vmatpush2.msra.mxu0 0.0
    %1144 = vmatprep.subr.mxu0 0.0
    %1145 = vmatpush2.msra.mxu0 0.0
    %1146 = vmatprep.subr.mxu0 0.0
    %1147 = vmatpush2.msra.mxu0 0.0
    %1148 = vmatprep.subr.mxu0 0.0
    %1149 = vmatpush2.msra.mxu0 0.0
    %1150 = vmatprep.subr.mxu0 0.0
    %1151 = vmatpush2.msra.mxu0 0.0
    %1152 = vmatprep.subr.mxu0 0.0
    %1153 = vmatpush2.msra.mxu0 0.0
    %1154 = vmatprep.subr.mxu0 0.0
    %1155 = vmatpush2.msra.mxu0 0.0
    %1156 = vmatprep.subr.mxu0 0.0
    %1157 = vmatpush2.msra.mxu0 0.0
    %1158 = vmatprep.subr.mxu0 0.0
    %1159 = vmatpush2.msra.mxu0 0.0
    %1160 = vmatprep.subr.mxu0 0.0
    %1161 = vmatpush2.msra.mxu0 0.0
    %1162 = vmatprep.subr.mxu0 0.0
    %1163 = vmatpush2.msra.mxu0 0.0
    %1164 = vmatprep.subr.mxu0 0.0
    %1165 = vmatpush2.msra.mxu0 0.0
    %1166 = vmatprep.subr.mxu0 0.0
    %1167 = vmatpush2.msra.mxu0 0.0
    %1168 = vmatprep.subr.mxu0 0.0
    %1169 = vmatpush2.msra.mxu0 0.0
    %1170 = vmatprep.subr.mxu0 0.0
    %1171 = vmatpush2.msra.mxu0 0.0
    %1172 = vmatprep.subr.mxu0 0.0
    %1173 = vmatpush2.msra.mxu0 0.0
    %1174 = vmatprep.mubr.f32.mxu0 0.0
    %1175 = vmatmul.mubr.f32.gmra.mxu0 %v1025
    %v1176 = vpop.f32.mrf.mxu0
    %v1177 = vadd.f32 0.0, %v1176
    %v1178 = vpop.f32.mrf.mxu0
    %1179 = vdwg.mxu0
    %v1180 = vadd.f32 %v1093, %v1177
    %v1181 = vmul.f32 %v1180, 0.5
    %v1182 = vtanh.pop %v1181
    %v1183 = vmul.f32 %v1182, 0.5
    %v1184 = vadd.f32 %v1183, 0.5
    %v1185 = vadd.f32 %v1180, %v179
    %v1186 = vtanh.pop %v1185
    %v1187 = vmul.f32 %v1184, %v1025
    %v1188 = vsub.f32 1.0, %v1184
    %v1189 = vmul.f32 %v185, %v1188
    %v1190 = vadd.f32 %v1189, %v187
    %v1191 = vmul.f32 %v1190, %v1186
    %v1192 = vadd.f32 %v1187, %v1191
    %v1194 = vcombine.high %v1192, %v1192
    %v1196 = vunpack.c.l.s4 1966171168
    %v1197 = vunpack.c.0.s8 %v1196
    %v1198 = vlaneseq
    %v1199 = vshrl.u32 %v1198, 7
    %v1200 = vsub.s32 %v1197, %v1199
    %v1201 = vrot.slane %v1192, %v1200
    %v1203 = vunpack.c.l.s4 1966171168
    %v1204 = vunpack.c.0.s8 %v1203
    %v1205 = vlaneseq
    %v1206 = vshrl.u32 %v1205, 7
    %v1207 = vsub.s32 %v1204, %v1206
    %v1208 = vrot.slane %v1194, %v1207
    %v1209 = vcombine.high %v1201, %v1201
    %v1210 = vcombine.high %v1208, %v1208
    %v1212 = vunpack.c.l.s4 1966171168
    %v1213 = vunpack.c.0.s8 %v1212
    %v1214 = vlaneseq
    %v1215 = vshrl.u32 %v1214, 7
    %v1216 = vsub.s32 %v1213, %v1215
    %v1217 = vrot.slane %v1201, %v1216
    %v1219 = vunpack.c.l.s4 1966171168
    %v1220 = vunpack.c.0.s8 %v1219
    %v1221 = vlaneseq
    %v1222 = vshrl.u32 %v1221, 7
    %v1223 = vsub.s32 %v1220, %v1222
    %v1224 = vrot.slane %v1208, %v1223
    %v1226 = vunpack.c.l.s4 1966171168
    %v1227 = vunpack.c.0.s8 %v1226
    %v1228 = vlaneseq
    %v1229 = vshrl.u32 %v1228, 7
    %v1230 = vsub.s32 %v1227, %v1229
    %v1231 = vrot.slane %v1209, %v1230
    %v1233 = vunpack.c.l.s4 1966171168
    %v1234 = vunpack.c.0.s8 %v1233
    %v1235 = vlaneseq
    %v1236 = vshrl.u32 %v1235, 7
    %v1237 = vsub.s32 %v1234, %v1236
    %v1238 = vrot.slane %v1210, %v1237
    %v1239 = vcombine.high %v1217, %v1217
    %v1240 = vcombine.high %v1224, %v1224
    %v1241 = vcombine.high %v1231, %v1231
    %v1242 = vcombine.high %v1238, %v1238
    %1251 = vst [vmem:[#allocation11 + $0x6] sm:$0x1] %v1217
    %1252 = vst [vmem:[#allocation11 + $0xe] sm:$0x1] %v1231
    %1253 = vst [vmem:[#allocation11 + $0x16] sm:$0x1] %v1239
    %1254 = vst [vmem:[#allocation11 + $0x1e] sm:$0x1] %v1241
    %1255 = vst [vmem:[#allocation11 + $0x26] sm:$0x1] %v1224
    %1256 = vst [vmem:[#allocation11 + $0x2e] sm:$0x1] %v1238
    %1257 = vst [vmem:[#allocation11 + $0x36] sm:$0x1] %v1240
    %1258 = vst [vmem:[#allocation11 + $0x3e] sm:$0x1] %v1242
    %s1259 = scalar_lea.vmem [#allocation3], 56
    %v1260 = vld [vmem:[%s1259] sm:$0xff]
    %v1261 = vld [vmem:[#allocation9] sm:$0xff]
    %v1262 = vld [vmem:[#allocation9 + $0x8] sm:$0xff]
    %v1263 = vld [vmem:[#allocation9 + $0x10] sm:$0xff]
    %v1264 = vld [vmem:[#allocation9 + $0x18] sm:$0xff]
    %v1265 = vld [vmem:[#allocation9 + $0x20] sm:$0xff]
    %v1266 = vld [vmem:[#allocation9 + $0x28] sm:$0xff]
    %v1267 = vld [vmem:[#allocation9 + $0x30] sm:$0xff]
    %v1268 = vld [vmem:[#allocation9 + $0x38] sm:$0xff]
    %v1269 = vld [vmem:[#allocation9 + $0x40] sm:$0xff]
    %v1270 = vld [vmem:[#allocation9 + $0x48] sm:$0xff]
    %v1271 = vld [vmem:[#allocation9 + $0x50] sm:$0xff]
    %v1272 = vld [vmem:[#allocation9 + $0x58] sm:$0xff]
    %v1273 = vld [vmem:[#allocation9 + $0x60] sm:$0xff]
    %v1274 = vld [vmem:[#allocation9 + $0x68] sm:$0xff]
    %v1275 = vld [vmem:[#allocation9 + $0x70] sm:$0xff]
    %v1276 = vld [vmem:[#allocation9 + $0x78] sm:$0xff]
    %1277 = vmatprep.subr.mxu0 0.0
    %1278 = vmatpush1.msra.mxu0 %v1276
    %1279 = vmatprep.subr.mxu0 0.0
    %1280 = vmatpush1.msra.mxu0 %v1275
    %1281 = vmatprep.subr.mxu0 0.0
    %1282 = vmatpush1.msra.mxu0 %v1274
    %1283 = vmatprep.subr.mxu0 0.0
    %1284 = vmatpush1.msra.mxu0 %v1273
    %1285 = vmatprep.subr.mxu0 0.0
    %1286 = vmatpush1.msra.mxu0 %v1272
    %1287 = vmatprep.subr.mxu0 0.0
    %1288 = vmatpush1.msra.mxu0 %v1271
    %1289 = vmatprep.subr.mxu0 0.0
    %1290 = vmatpush1.msra.mxu0 %v1270
    %1291 = vmatprep.subr.mxu0 0.0
    %1292 = vmatpush1.msra.mxu0 %v1269
    %1293 = vmatprep.subr.mxu0 0.0
    %1294 = vmatpush1.msra.mxu0 %v1268
    %1295 = vmatprep.subr.mxu0 0.0
    %1296 = vmatpush1.msra.mxu0 %v1267
    %1297 = vmatprep.subr.mxu0 0.0
    %1298 = vmatpush1.msra.mxu0 %v1266
    %1299 = vmatprep.subr.mxu0 0.0
    %1300 = vmatpush1.msra.mxu0 %v1265
    %1301 = vmatprep.subr.mxu0 0.0
    %1302 = vmatpush1.msra.mxu0 %v1264
    %1303 = vmatprep.subr.mxu0 0.0
    %1304 = vmatpush1.msra.mxu0 %v1263
    %1305 = vmatprep.subr.mxu0 0.0
    %1306 = vmatpush1.msra.mxu0 %v1262
    %1307 = vmatprep.subr.mxu0 0.0
    %1308 = vmatpush1.msra.mxu0 %v1261
    %1309 = vmatprep.subr.mxu0 0.0
    %1310 = vmatpush2.msra.mxu0 0.0
    %1311 = vmatprep.subr.mxu0 0.0
    %1312 = vmatpush2.msra.mxu0 0.0
    %1313 = vmatprep.subr.mxu0 0.0
    %1314 = vmatpush2.msra.mxu0 0.0
    %1315 = vmatprep.subr.mxu0 0.0
    %1316 = vmatpush2.msra.mxu0 0.0
    %1317 = vmatprep.subr.mxu0 0.0
    %1318 = vmatpush2.msra.mxu0 0.0
    %1319 = vmatprep.subr.mxu0 0.0
    %1320 = vmatpush2.msra.mxu0 0.0
    %1321 = vmatprep.subr.mxu0 0.0
    %1322 = vmatpush2.msra.mxu0 0.0
    %1323 = vmatprep.subr.mxu0 0.0
    %1324 = vmatpush2.msra.mxu0 0.0
    %1325 = vmatprep.subr.mxu0 0.0
    %1326 = vmatpush2.msra.mxu0 0.0
    %1327 = vmatprep.subr.mxu0 0.0
    %1328 = vmatpush2.msra.mxu0 0.0
    %1329 = vmatprep.subr.mxu0 0.0
    %1330 = vmatpush2.msra.mxu0 0.0
    %1331 = vmatprep.subr.mxu0 0.0
    %1332 = vmatpush2.msra.mxu0 0.0
    %1333 = vmatprep.subr.mxu0 0.0
    %1334 = vmatpush2.msra.mxu0 0.0
    %1335 = vmatprep.subr.mxu0 0.0
    %1336 = vmatpush2.msra.mxu0 0.0
    %1337 = vmatprep.subr.mxu0 0.0
    %1338 = vmatpush2.msra.mxu0 0.0
    %1339 = vmatprep.subr.mxu0 0.0
    %1340 = vmatpush2.msra.mxu0 0.0
    %1341 = vmatprep.mubr.f32.mxu0 0.0
    %1342 = vmatmul.mubr.f32.gmra.mxu0 %v1192
    %v1343 = vpop.f32.mrf.mxu0
    %v1344 = vadd.f32 0.0, %v1343
    %v1345 = vpop.f32.mrf.mxu0
    %1346 = vdwg.mxu0
    %v1347 = vadd.f32 %v1260, %v1344
    %v1348 = vmul.f32 %v1347, 0.5
    %v1349 = vtanh.pop %v1348
    %v1350 = vmul.f32 %v1349, 0.5
    %v1351 = vadd.f32 %v1350, 0.5
    %v1352 = vadd.f32 %v1347, %v179
    %v1353 = vtanh.pop %v1352
    %v1354 = vmul.f32 %v1351, %v1192
    %v1355 = vsub.f32 1.0, %v1351
    %v1356 = vmul.f32 %v185, %v1355
    %v1357 = vadd.f32 %v1356, %v187
    %v1358 = vmul.f32 %v1357, %v1353
    %v1359 = vadd.f32 %v1354, %v1358
    %v1361 = vcombine.high %v1359, %v1359
    %v1363 = vunpack.c.l.s4 1966171168
    %v1364 = vunpack.c.0.s8 %v1363
    %v1365 = vlaneseq
    %v1366 = vshrl.u32 %v1365, 7
    %v1367 = vsub.s32 %v1364, %v1366
    %v1368 = vrot.slane %v1359, %v1367
    %v1370 = vunpack.c.l.s4 1966171168
    %v1371 = vunpack.c.0.s8 %v1370
    %v1372 = vlaneseq
    %v1373 = vshrl.u32 %v1372, 7
    %v1374 = vsub.s32 %v1371, %v1373
    %v1375 = vrot.slane %v1361, %v1374
    %v1376 = vcombine.high %v1368, %v1368
    %v1377 = vcombine.high %v1375, %v1375
    %v1379 = vunpack.c.l.s4 1966171168
    %v1380 = vunpack.c.0.s8 %v1379
    %v1381 = vlaneseq
    %v1382 = vshrl.u32 %v1381, 7
    %v1383 = vsub.s32 %v1380, %v1382
    %v1384 = vrot.slane %v1368, %v1383
    %v1386 = vunpack.c.l.s4 1966171168
    %v1387 = vunpack.c.0.s8 %v1386
    %v1388 = vlaneseq
    %v1389 = vshrl.u32 %v1388, 7
    %v1390 = vsub.s32 %v1387, %v1389
    %v1391 = vrot.slane %v1375, %v1390
    %v1393 = vunpack.c.l.s4 1966171168
    %v1394 = vunpack.c.0.s8 %v1393
    %v1395 = vlaneseq
    %v1396 = vshrl.u32 %v1395, 7
    %v1397 = vsub.s32 %v1394, %v1396
    %v1398 = vrot.slane %v1376, %v1397
    %v1400 = vunpack.c.l.s4 1966171168
    %v1401 = vunpack.c.0.s8 %v1400
    %v1402 = vlaneseq
    %v1403 = vshrl.u32 %v1402, 7
    %v1404 = vsub.s32 %v1401, %v1403
    %v1405 = vrot.slane %v1377, %v1404
    %v1406 = vcombine.high %v1384, %v1384
    %v1407 = vcombine.high %v1391, %v1391
    %v1408 = vcombine.high %v1398, %v1398
    %v1409 = vcombine.high %v1405, %v1405
    %1418 = vst [vmem:[#allocation11 + $0x7] sm:$0x1] %v1384
    %1419 = vst [vmem:[#allocation11 + $0xf] sm:$0x1] %v1398
    %1420 = vst [vmem:[#allocation11 + $0x17] sm:$0x1] %v1406
    %1421 = vst [vmem:[#allocation11 + $0x1f] sm:$0x1] %v1408
    %1422 = vst [vmem:[#allocation11 + $0x27] sm:$0x1] %v1391
    %1423 = vst [vmem:[#allocation11 + $0x2f] sm:$0x1] %v1405
    %1424 = vst [vmem:[#allocation11 + $0x37] sm:$0x1] %v1407
    %1425 = vst [vmem:[#allocation11 + $0x3f] sm:$0x1] %v1409
    %1426 = vst [vmem:[#allocation2] sm:$0xff] %v1359
    // Predicated region
    $region42: #{tpu_custom_call.1} parent=1 // pred_check
      _
    $region43: #{tpu_custom_call.1} parent=1 // pred_check_branch
      %1428 = sbr.rel (0) target = $region45
    $region44: #{tpu_custom_call.1} parent=1 // pred_region
      %s1430 = ssub.s32 1024, 1024
      %1431 = vsyncadd [#allocation5], %s1430
      %s1432 = sshll.u32 [#allocation11], 4
      %s1433 = int_to_ptr.vmem [resolvable:$true] %s1432
      %1438 = dma.vmem_to_hbm [thread:$0]  %s1433, 1024, %s5, [#allocation5], 128, 128, 8
    $region45: #{tpu_custom_call.1} parent=1 // pred_fallthru
      _
    // Predicated region
    $region46: #{tpu_custom_call.1} parent=1 // pred_check
      _
    $region47: #{tpu_custom_call.1} parent=1 // pred_check_branch
      %1440 = sbr.rel (0) target = $region49
    $region48: #{tpu_custom_call.1} parent=1 // pred_region
      %1441 = dma.done [#allocation5], 1024
    $region49: #{tpu_custom_call.1} parent=1 // pred_fallthru
      _
    %1442 = vsyncpa [#allocation4], 1
    %1443 = vsyncpa [#allocation8], 1
    %1444 = vsyncpa [#allocation5], 1
    %1445 = vsyncpa [#allocation6], 1

</llo_original>
